<compile_context>
chip_gen: v7x
topology: tpu7x:2x2x1
jax: 0.10.0
libtpu: 0.0.40
codegen_flags: <defaults>
</compile_context>

<pallas_src>
import functools

import jax
import jax.numpy as jnp
from jax import lax
from jax.experimental import pallas as pl
from jax.experimental.pallas import tpu as pltpu


def _sigmoid(x):
    # sigmoid(x) == 0.5 * tanh(x/2) + 0.5 -> one EUP op, no exact VALU divide.
    return 0.5 * jnp.tanh(0.5 * x) + 0.5


def lstm_seq_kernel(xw_ref, hc0_ref, whh_ref, wlin_ref, blin_ref,
                    out_ref, h_ref, c_ref, *, hidden_size):
    """One grid step == one block of Tt LSTM timesteps.

    xw_ref  : (Tt, B, 4H)   precomputed x_t @ W_ih^T + (b_ih + b_hh) for this time block
    hc0_ref : (2, B, H)     packed initial (h0, c0), VMEM resident
    whh_ref : (H, 4H)       W_hh^T (gate order i, f, g, o), VMEM resident
    wlin_ref: (H, Opad)     W_lin^T zero-padded so Opad + 2H == slab width (multiple of 128)
    blin_ref: (1, Opad)     b_lin zero-padded
    out_ref : (B, Opad+2H)  lane-dense slab [logits | h_T | c_T], written once at the end
    h_ref, c_ref : (B, H)   VMEM scratch carried across grid steps
    """
    H = hidden_size
    tt = xw_ref.shape[0]
    t_blk = pl.program_id(0)

    @pl.when(t_blk == 0)
    def _init():
        h_ref[...] = hc0_ref[0]
        c_ref[...] = hc0_ref[1]

    w_hh = whh_ref[...]   # hoisted load; resident across the inner time loop

    def step(s, carry):
        h, c = carry
        # Only the recurrent matmul remains on the serial critical path.
        gates = jnp.dot(h, w_hh, preferred_element_type=jnp.float32) + xw_ref[s]
        i_g = _sigmoid(gates[:, 0:H])
        f_g = _sigmoid(gates[:, H:2 * H])
        g_g = jnp.tanh(gates[:, 2 * H:3 * H])
        o_g = _sigmoid(gates[:, 3 * H:4 * H])
        c_new = f_g * c + i_g * g_g
        h_new = o_g * jnp.tanh(c_new)
        return h_new, c_new

    h, c = lax.fori_loop(0, tt, step, (h_ref[...], c_ref[...]), unroll=True)
    h_ref[...] = h
    c_ref[...] = c

    @pl.when(t_blk == pl.num_programs(0) - 1)
    def _finalize():
        y = jnp.dot(h, wlin_ref[...], preferred_element_type=jnp.float32) + blin_ref[...]
        # One unmasked, lane-dense store of the whole slab.
        out_ref[...] = jnp.concatenate([y, h, c], axis=-1).astype(out_ref.dtype)


def prepare_params(w_ih, w_hh, b_ih, b_hh, w_lin, b_lin):
    """One-time parameter packing: transposes, bias fusion, lane padding (outside jit)."""
    H = w_hh.shape[1]
    O = w_lin.shape[0]
    slab_w = ((O + 2 * H + 127) // 128) * 128
    o_pad = slab_w - 2 * H                                   # >= O by construction
    wih_t = w_ih.T.astype(jnp.float32)                       # (I, 4H)
    whh_t = w_hh.T.astype(jnp.float32)                       # (H, 4H)
    gate_bias = (b_ih + b_hh).astype(jnp.float32)[None, None, :]          # (1, 1, 4H)
    wlin_pad = jnp.zeros((H, o_pad), jnp.float32).at[:, :O].set(w_lin.T.astype(jnp.float32))
    blin_pad = jnp.zeros((1, o_pad), jnp.float32).at[:, :O].set(b_lin.astype(jnp.float32))
    return dict(wih_t=wih_t, whh_t=whh_t, gate_bias=gate_bias,
                wlin_pad=wlin_pad, blin_pad=blin_pad,
                hidden_size=H, output_size=O, o_pad=o_pad, slab_w=slab_w)


def lstm_net_forward(x, prepared, hidden=None, time_block=32):
    """Equivalent of LSTMNet.forward: returns (out, (hn, cn)); x is (B, T, I) batch-first."""
    B, T, I = x.shape
    H = prepared["hidden_size"]
    O = prepared["output_size"]
    o_pad = prepared["o_pad"]
    slab_w = prepared["slab_w"]

    # Pad batch to a sublane multiple (8) so vreg rows / MXU rows are occupied.
    Bp = ((B + 7) // 8) * 8
    if hidden is None:
        h0 = jnp.zeros((Bp, H), jnp.float32)
        c0 = jnp.zeros((Bp, H), jnp.float32)
    else:
        h0_in, c0_in = hidden
        h0 = jnp.zeros((Bp, H), jnp.float32).at[:B].set(h0_in.reshape(B, H).astype(jnp.float32))
        c0 = jnp.zeros((Bp, H), jnp.float32).at[:B].set(c0_in.reshape(B, H).astype(jnp.float32))
    hc0 = jnp.stack([h0, c0], axis=0)                        # (2, Bp, H)

    x32 = x.astype(jnp.float32)
    if Bp != B:
        x32 = jnp.zeros((Bp, T, I), jnp.float32).at[:B].set(x32)

    # Hoisted input projection: one big (Bp*T, I) @ (I, 4H) matmul, output already
    # time-major, with both LSTM biases fused in.
    xw = jnp.einsum("bti,ig->tbg", x32, prepared["wih_t"],
                    precision=lax.Precision.HIGHEST) + prepared["gate_bias"]   # (T, Bp, 4H)

    # Time blocking: Tt steps per grid step (Tt divides T; whole sequence at toy sizes).
    tt = min(T, time_block)
    while T % tt:
        tt -= 1
    n_blocks = T // tt

    kernel = functools.partial(lstm_seq_kernel, hidden_size=H)

    slab = pl.pallas_call(
        kernel,
        out_shape=jax.ShapeDtypeStruct((Bp, slab_w), jnp.float32),
        grid=(n_blocks,),
        in_specs=[
            pl.BlockSpec((tt, Bp, 4 * H), lambda t: (t, 0, 0)),   # xW time block (pipelined)
            pl.BlockSpec((2, Bp, H), lambda t: (0, 0, 0)),        # packed (h0, c0), resident
            pl.BlockSpec((H, 4 * H), lambda t: (0, 0)),           # W_hh^T, resident
            pl.BlockSpec((H, o_pad), lambda t: (0, 0)),           # W_lin^T (padded), resident
            pl.BlockSpec((1, o_pad), lambda t: (0, 0)),           # b_lin (padded), resident
        ],
        out_specs=pl.BlockSpec((Bp, slab_w), lambda t: (0, 0)),   # accumulator-style output
        scratch_shapes=[
            pltpu.VMEM((Bp, H), jnp.float32),                     # h carry
            pltpu.VMEM((Bp, H), jnp.float32),                     # c carry
        ],
        compiler_params=pltpu.CompilerParams(
            dimension_semantics=("arbitrary",)),                  # time recurrence is serial
    )(xw, hc0, prepared["whh_t"], prepared["wlin_pad"], prepared["blin_pad"])

    out = slab[:B, :O]
    hn = slab[:B, o_pad:o_pad + H][None]            # (1, B, H) like PyTorch
    cn = slab[:B, o_pad + H:o_pad + 2 * H][None]    # (1, B, H)
    return out, (hn, cn)


def lstm_reference(x, w_ih, w_hh, b_ih, b_hh, w_lin, b_lin):
    """Pure-JAX reference matching nn.LSTM (1 layer, batch_first) + Linear."""
    B, T, _ = x.shape
    H = w_hh.shape[1]
    hp = lax.Precision.HIGHEST
    h = jnp.zeros((B, H), jnp.float32)
    c = jnp.zeros((B, H), jnp.float32)
    for t in range(T):
        g = (jnp.dot(x[:, t], w_ih.T, precision=hp) + b_ih
             + jnp.dot(h, w_hh.T, precision=hp) + b_hh)
        i_g = 1.0 / (1.0 + jnp.exp(-g[:, 0:H]))
        f_g = 1.0 / (1.0 + jnp.exp(-g[:, H:2 * H]))
        g_g = jnp.tanh(g[:, 2 * H:3 * H])
        o_g = 1.0 / (1.0 + jnp.exp(-g[:, 3 * H:4 * H]))
        c = f_g * c + i_g * g_g
        h = o_g * jnp.tanh(c)
    out = jnp.dot(h, w_lin.T, precision=hp) + b_lin
    return out, h, c


if __name__ == "__main__":
    input_size, hidden_size, output_size = 16, 32, 4
    batch, seq = 2, 8

    key = jax.random.PRNGKey(0)
    kx, k1, k2, k3, k4, k5, k6 = jax.random.split(key, 7)

    bound = 1.0 / (hidden_size ** 0.5)   # PyTorch default init bound for LSTM & this Linear
    w_ih = jax.random.uniform(k1, (4 * hidden_size, input_size), jnp.float32, -bound, bound)
    w_hh = jax.random.uniform(k2, (4 * hidden_size, hidden_size), jnp.float32, -bound, bound)
    b_ih = jax.random.uniform(k3, (4 * hidden_size,), jnp.float32, -bound, bound)
    b_hh = jax.random.uniform(k4, (4 * hidden_size,), jnp.float32, -bound, bound)
    w_lin = jax.random.uniform(k5, (output_size, hidden_size), jnp.float32, -bound, bound)
    b_lin = jax.random.uniform(k6, (output_size,), jnp.float32, -bound, bound)

    x = jax.random.normal(kx, (batch, seq, input_size), jnp.float32)

    prepared = prepare_params(w_ih, w_hh, b_ih, b_hh, w_lin, b_lin)   # one-time, outside jit
    fwd = jax.jit(lambda xx: lstm_net_forward(xx, prepared))

    out, (hn, cn) = fwd(x)
    jax.block_until_ready((out, hn, cn))

    out_ref, h_ref, c_ref = lstm_reference(x, w_ih, w_hh, b_ih, b_hh, w_lin, b_lin)

    assert out.shape == (batch, output_size)
    assert hn.shape == (1, batch, hidden_size) and cn.shape == (1, batch, hidden_size)
    # f32 everywhere; tanh-form sigmoid is mathematically identical to 1/(1+exp(-x)).
    assert jnp.allclose(out, out_ref, atol=2e-4, rtol=2e-4)
    assert jnp.allclose(hn[0], h_ref, atol=2e-4, rtol=2e-4)
    assert jnp.allclose(cn[0], c_ref, atol=2e-4, rtol=2e-4)

    print("KERNEL_OK")
</pallas_src>

<mosaic_0001>
module attributes {stable_mosaic.version = 11 : i64} {
  func.func @lstm_seq_kernel(%arg0: i32, %arg1: memref<8x8x128xf32, #tpu.memory_space<vmem>>, %arg2: memref<2x8x32xf32, #tpu.memory_space<vmem>>, %arg3: memref<32x128xf32, #tpu.memory_space<vmem>>, %arg4: memref<32x64xf32, #tpu.memory_space<vmem>>, %arg5: memref<1x64xf32, #tpu.memory_space<vmem>>, %arg6: memref<8x128xf32, #tpu.memory_space<vmem>>, %arg7: memref<8x32xf32, #tpu.memory_space<vmem>>, %arg8: memref<8x32xf32, #tpu.memory_space<vmem>>) attributes {dimension_semantics = [#tpu.dimension_semantics<arbitrary>], iteration_bounds = array<i64: 1>, scalar_prefetch = 0 : i64, scratch_operands = 2 : i64, tpu.core_type = #tpu.core_type<tc>, window_params = [{transform_indices = @transform_0, window_bounds = array<i64: 8, 8, 128>}, {pipeline_mode = #tpu.pipeline_mode<synchronous>, transform_indices = @transform_1, window_bounds = array<i64: 2, 8, 32>}, {pipeline_mode = #tpu.pipeline_mode<synchronous>, transform_indices = @transform_2, window_bounds = array<i64: 32, 128>}, {pipeline_mode = #tpu.pipeline_mode<synchronous>, transform_indices = @transform_3, window_bounds = array<i64: 32, 64>}, {pipeline_mode = #tpu.pipeline_mode<synchronous>, transform_indices = @transform_4, window_bounds = array<i64: 1, 64>}, {pipeline_mode = #tpu.pipeline_mode<synchronous>, transform_indices = @transform_5, window_bounds = array<i64: 8, 128>}]} {
    %c0_i32 = arith.constant 0 : i32
    %0 = arith.cmpi eq, %arg0, %c0_i32 : i32
    %1 = arith.extui %0 : i1 to i32
    %c0_i32_0 = arith.constant 0 : i32
    %2 = arith.cmpi ne, %1, %c0_i32_0 : i32
    scf.if %2 {
      %c0_108 = arith.constant 0 : index
      %c0_109 = arith.constant 0 : index
      %c0_110 = arith.constant 0 : index
      %299 = vector.load %arg2[%c0_108, %c0_109, %c0_110] : memref<2x8x32xf32, #tpu.memory_space<vmem>>, vector<1x8x32xf32>
      %300 = vector.shape_cast %299 : vector<1x8x32xf32> to vector<8x32xf32>
      %c0_111 = arith.constant 0 : index
      %c0_112 = arith.constant 0 : index
      %301 = vector.load %arg7[%c0_111, %c0_112] : memref<8x32xf32, #tpu.memory_space<vmem>>, vector<8x32xf32>
      tpu.vector_store %arg7[%c0_111, %c0_112], %300 {strides = array<i32>} : memref<8x32xf32, #tpu.memory_space<vmem>>, vector<8x32xf32>,
      %c1 = arith.constant 1 : index
      %c0_113 = arith.constant 0 : index
      %c0_114 = arith.constant 0 : index
      %302 = vector.load %arg2[%c1, %c0_113, %c0_114] : memref<2x8x32xf32, #tpu.memory_space<vmem>>, vector<1x8x32xf32>
      %303 = vector.shape_cast %302 : vector<1x8x32xf32> to vector<8x32xf32>
      %c0_115 = arith.constant 0 : index
      %c0_116 = arith.constant 0 : index
      %304 = vector.load %arg8[%c0_115, %c0_116] : memref<8x32xf32, #tpu.memory_space<vmem>>, vector<8x32xf32>
      tpu.vector_store %arg8[%c0_115, %c0_116], %303 {strides = array<i32>} : memref<8x32xf32, #tpu.memory_space<vmem>>, vector<8x32xf32>,
    } else {
    }
    %c0 = arith.constant 0 : index
    %c0_1 = arith.constant 0 : index
    %3 = vector.load %arg3[%c0, %c0_1] : memref<32x128xf32, #tpu.memory_space<vmem>>, vector<32x128xf32>
    %c0_2 = arith.constant 0 : index
    %c0_3 = arith.constant 0 : index
    %4 = vector.load %arg7[%c0_2, %c0_3] : memref<8x32xf32, #tpu.memory_space<vmem>>, vector<8x32xf32>
    %c0_4 = arith.constant 0 : index
    %c0_5 = arith.constant 0 : index
    %5 = vector.load %arg8[%c0_4, %c0_5] : memref<8x32xf32, #tpu.memory_space<vmem>>, vector<8x32xf32>
    %c0_i32_6 = arith.constant 0 : i32
    %cst = arith.constant dense<0.000000e+00> : vector<8x128xf32>
    %6 = tpu.matmul %4, %3, %cst {dimension_numbers = #tpu.dot_dimension_numbers<[1], [0], [0], [1], [0, 0, 1, 1], [], []>} : vector<8x32xf32>, vector<32x128xf32>, vector<8x128xf32> -> vector<8x128xf32>
    %7 = arith.index_cast %c0_i32_6 : i32 to index
    %c0_7 = arith.constant 0 : index
    %c0_8 = arith.constant 0 : index
    %8 = vector.load %arg1[%7, %c0_7, %c0_8] : memref<8x8x128xf32, #tpu.memory_space<vmem>>, vector<1x8x128xf32>
    %9 = vector.shape_cast %8 : vector<1x8x128xf32> to vector<8x128xf32>
    %10 = arith.addf %6, %9 : vector<8x128xf32>
    %11 = vector.extract_strided_slice %10 {offsets = [0, 0], sizes = [8, 32], strides = [1, 1]} : vector<8x128xf32> to vector<8x32xf32>
    %cst_9 = arith.constant 5.000000e-01 : f32
    %12 = vector.broadcast %cst_9 : f32 to vector<8x32xf32>
    %13 = arith.mulf %12, %11 : vector<8x32xf32>
    %14 = math.tanh %13 : vector<8x32xf32>
    %cst_10 = arith.constant 5.000000e-01 : f32
    %15 = vector.broadcast %cst_10 : f32 to vector<8x32xf32>
    %16 = arith.mulf %15, %14 : vector<8x32xf32>
    %cst_11 = arith.constant 5.000000e-01 : f32
    %17 = vector.broadcast %cst_11 : f32 to vector<8x32xf32>
    %18 = arith.addf %16, %17 : vector<8x32xf32>
    %19 = vector.extract_strided_slice %10 {offsets = [0, 32], sizes = [8, 32], strides = [1, 1]} : vector<8x128xf32> to vector<8x32xf32>
    %cst_12 = arith.constant 5.000000e-01 : f32
    %20 = vector.broadcast %cst_12 : f32 to vector<8x32xf32>
    %21 = arith.mulf %20, %19 : vector<8x32xf32>
    %22 = math.tanh %21 : vector<8x32xf32>
    %cst_13 = arith.constant 5.000000e-01 : f32
    %23 = vector.broadcast %cst_13 : f32 to vector<8x32xf32>
    %24 = arith.mulf %23, %22 : vector<8x32xf32>
    %cst_14 = arith.constant 5.000000e-01 : f32
    %25 = vector.broadcast %cst_14 : f32 to vector<8x32xf32>
    %26 = arith.addf %24, %25 : vector<8x32xf32>
    %27 = vector.extract_strided_slice %10 {offsets = [0, 64], sizes = [8, 32], strides = [1, 1]} : vector<8x128xf32> to vector<8x32xf32>
    %28 = math.tanh %27 : vector<8x32xf32>
    %29 = vector.extract_strided_slice %10 {offsets = [0, 96], sizes = [8, 32], strides = [1, 1]} : vector<8x128xf32> to vector<8x32xf32>
    %cst_15 = arith.constant 5.000000e-01 : f32
    %30 = vector.broadcast %cst_15 : f32 to vector<8x32xf32>
    %31 = arith.mulf %30, %29 : vector<8x32xf32>
    %32 = math.tanh %31 : vector<8x32xf32>
    %cst_16 = arith.constant 5.000000e-01 : f32
    %33 = vector.broadcast %cst_16 : f32 to vector<8x32xf32>
    %34 = arith.mulf %33, %32 : vector<8x32xf32>
    %cst_17 = arith.constant 5.000000e-01 : f32
    %35 = vector.broadcast %cst_17 : f32 to vector<8x32xf32>
    %36 = arith.addf %34, %35 : vector<8x32xf32>
    %37 = arith.mulf %26, %5 : vector<8x32xf32>
    %38 = arith.mulf %18, %28 : vector<8x32xf32>
    %39 = arith.addf %37, %38 : vector<8x32xf32>
    %40 = math.tanh %39 : vector<8x32xf32>
    %41 = arith.mulf %36, %40 : vector<8x32xf32>
    %c1_i32 = arith.constant 1 : i32
    %cst_18 = arith.constant dense<0.000000e+00> : vector<8x128xf32>
    %42 = tpu.matmul %41, %3, %cst_18 {dimension_numbers = #tpu.dot_dimension_numbers<[1], [0], [0], [1], [0, 0, 1, 1], [], []>} : vector<8x32xf32>, vector<32x128xf32>, vector<8x128xf32> -> vector<8x128xf32>
    %43 = arith.index_cast %c1_i32 : i32 to index
    %c0_19 = arith.constant 0 : index
    %c0_20 = arith.constant 0 : index
    %44 = vector.load %arg1[%43, %c0_19, %c0_20] : memref<8x8x128xf32, #tpu.memory_space<vmem>>, vector<1x8x128xf32>
    %45 = vector.shape_cast %44 : vector<1x8x128xf32> to vector<8x128xf32>
    %46 = arith.addf %42, %45 : vector<8x128xf32>
    %47 = vector.extract_strided_slice %46 {offsets = [0, 0], sizes = [8, 32], strides = [1, 1]} : vector<8x128xf32> to vector<8x32xf32>
    %cst_21 = arith.constant 5.000000e-01 : f32
    %48 = vector.broadcast %cst_21 : f32 to vector<8x32xf32>
    %49 = arith.mulf %48, %47 : vector<8x32xf32>
    %50 = math.tanh %49 : vector<8x32xf32>
    %cst_22 = arith.constant 5.000000e-01 : f32
    %51 = vector.broadcast %cst_22 : f32 to vector<8x32xf32>
    %52 = arith.mulf %51, %50 : vector<8x32xf32>
    %cst_23 = arith.constant 5.000000e-01 : f32
    %53 = vector.broadcast %cst_23 : f32 to vector<8x32xf32>
    %54 = arith.addf %52, %53 : vector<8x32xf32>
    %55 = vector.extract_strided_slice %46 {offsets = [0, 32], sizes = [8, 32], strides = [1, 1]} : vector<8x128xf32> to vector<8x32xf32>
    %cst_24 = arith.constant 5.000000e-01 : f32
    %56 = vector.broadcast %cst_24 : f32 to vector<8x32xf32>
    %57 = arith.mulf %56, %55 : vector<8x32xf32>
    %58 = math.tanh %57 : vector<8x32xf32>
    %cst_25 = arith.constant 5.000000e-01 : f32
    %59 = vector.broadcast %cst_25 : f32 to vector<8x32xf32>
    %60 = arith.mulf %59, %58 : vector<8x32xf32>
    %cst_26 = arith.constant 5.000000e-01 : f32
    %61 = vector.broadcast %cst_26 : f32 to vector<8x32xf32>
    %62 = arith.addf %60, %61 : vector<8x32xf32>
    %63 = vector.extract_strided_slice %46 {offsets = [0, 64], sizes = [8, 32], strides = [1, 1]} : vector<8x128xf32> to vector<8x32xf32>
    %64 = math.tanh %63 : vector<8x32xf32>
    %65 = vector.extract_strided_slice %46 {offsets = [0, 96], sizes = [8, 32], strides = [1, 1]} : vector<8x128xf32> to vector<8x32xf32>
    %cst_27 = arith.constant 5.000000e-01 : f32
    %66 = vector.broadcast %cst_27 : f32 to vector<8x32xf32>
    %67 = arith.mulf %66, %65 : vector<8x32xf32>
    %68 = math.tanh %67 : vector<8x32xf32>
    %cst_28 = arith.constant 5.000000e-01 : f32
    %69 = vector.broadcast %cst_28 : f32 to vector<8x32xf32>
    %70 = arith.mulf %69, %68 : vector<8x32xf32>
    %cst_29 = arith.constant 5.000000e-01 : f32
    %71 = vector.broadcast %cst_29 : f32 to vector<8x32xf32>
    %72 = arith.addf %70, %71 : vector<8x32xf32>
    %73 = arith.mulf %62, %39 : vector<8x32xf32>
    %74 = arith.mulf %54, %64 : vector<8x32xf32>
    %75 = arith.addf %73, %74 : vector<8x32xf32>
    %76 = math.tanh %75 : vector<8x32xf32>
    %77 = arith.mulf %72, %76 : vector<8x32xf32>
    %c2_i32 = arith.constant 2 : i32
    %cst_30 = arith.constant dense<0.000000e+00> : vector<8x128xf32>
    %78 = tpu.matmul %77, %3, %cst_30 {dimension_numbers = #tpu.dot_dimension_numbers<[1], [0], [0], [1], [0, 0, 1, 1], [], []>} : vector<8x32xf32>, vector<32x128xf32>, vector<8x128xf32> -> vector<8x128xf32>
    %79 = arith.index_cast %c2_i32 : i32 to index
    %c0_31 = arith.constant 0 : index
    %c0_32 = arith.constant 0 : index
    %80 = vector.load %arg1[%79, %c0_31, %c0_32] : memref<8x8x128xf32, #tpu.memory_space<vmem>>, vector<1x8x128xf32>
    %81 = vector.shape_cast %80 : vector<1x8x128xf32> to vector<8x128xf32>
    %82 = arith.addf %78, %81 : vector<8x128xf32>
    %83 = vector.extract_strided_slice %82 {offsets = [0, 0], sizes = [8, 32], strides = [1, 1]} : vector<8x128xf32> to vector<8x32xf32>
    %cst_33 = arith.constant 5.000000e-01 : f32
    %84 = vector.broadcast %cst_33 : f32 to vector<8x32xf32>
    %85 = arith.mulf %84, %83 : vector<8x32xf32>
    %86 = math.tanh %85 : vector<8x32xf32>
    %cst_34 = arith.constant 5.000000e-01 : f32
    %87 = vector.broadcast %cst_34 : f32 to vector<8x32xf32>
    %88 = arith.mulf %87, %86 : vector<8x32xf32>
    %cst_35 = arith.constant 5.000000e-01 : f32
    %89 = vector.broadcast %cst_35 : f32 to vector<8x32xf32>
    %90 = arith.addf %88, %89 : vector<8x32xf32>
    %91 = vector.extract_strided_slice %82 {offsets = [0, 32], sizes = [8, 32], strides = [1, 1]} : vector<8x128xf32> to vector<8x32xf32>
    %cst_36 = arith.constant 5.000000e-01 : f32
    %92 = vector.broadcast %cst_36 : f32 to vector<8x32xf32>
    %93 = arith.mulf %92, %91 : vector<8x32xf32>
    %94 = math.tanh %93 : vector<8x32xf32>
    %cst_37 = arith.constant 5.000000e-01 : f32
    %95 = vector.broadcast %cst_37 : f32 to vector<8x32xf32>
    %96 = arith.mulf %95, %94 : vector<8x32xf32>
    %cst_38 = arith.constant 5.000000e-01 : f32
    %97 = vector.broadcast %cst_38 : f32 to vector<8x32xf32>
    %98 = arith.addf %96, %97 : vector<8x32xf32>
    %99 = vector.extract_strided_slice %82 {offsets = [0, 64], sizes = [8, 32], strides = [1, 1]} : vector<8x128xf32> to vector<8x32xf32>
    %100 = math.tanh %99 : vector<8x32xf32>
    %101 = vector.extract_strided_slice %82 {offsets = [0, 96], sizes = [8, 32], strides = [1, 1]} : vector<8x128xf32> to vector<8x32xf32>
    %cst_39 = arith.constant 5.000000e-01 : f32
    %102 = vector.broadcast %cst_39 : f32 to vector<8x32xf32>
    %103 = arith.mulf %102, %101 : vector<8x32xf32>
    %104 = math.tanh %103 : vector<8x32xf32>
    %cst_40 = arith.constant 5.000000e-01 : f32
    %105 = vector.broadcast %cst_40 : f32 to vector<8x32xf32>
    %106 = arith.mulf %105, %104 : vector<8x32xf32>
    %cst_41 = arith.constant 5.000000e-01 : f32
    %107 = vector.broadcast %cst_41 : f32 to vector<8x32xf32>
    %108 = arith.addf %106, %107 : vector<8x32xf32>
    %109 = arith.mulf %98, %75 : vector<8x32xf32>
    %110 = arith.mulf %90, %100 : vector<8x32xf32>
    %111 = arith.addf %109, %110 : vector<8x32xf32>
    %112 = math.tanh %111 : vector<8x32xf32>
    %113 = arith.mulf %108, %112 : vector<8x32xf32>
    %c3_i32 = arith.constant 3 : i32
    %cst_42 = arith.constant dense<0.000000e+00> : vector<8x128xf32>
    %114 = tpu.matmul %113, %3, %cst_42 {dimension_numbers = #tpu.dot_dimension_numbers<[1], [0], [0], [1], [0, 0, 1, 1], [], []>} : vector<8x32xf32>, vector<32x128xf32>, vector<8x128xf32> -> vector<8x128xf32>
    %115 = arith.index_cast %c3_i32 : i32 to index
    %c0_43 = arith.constant 0 : index
    %c0_44 = arith.constant 0 : index
    %116 = vector.load %arg1[%115, %c0_43, %c0_44] : memref<8x8x128xf32, #tpu.memory_space<vmem>>, vector<1x8x128xf32>
    %117 = vector.shape_cast %116 : vector<1x8x128xf32> to vector<8x128xf32>
    %118 = arith.addf %114, %117 : vector<8x128xf32>
    %119 = vector.extract_strided_slice %118 {offsets = [0, 0], sizes = [8, 32], strides = [1, 1]} : vector<8x128xf32> to vector<8x32xf32>
    %cst_45 = arith.constant 5.000000e-01 : f32
    %120 = vector.broadcast %cst_45 : f32 to vector<8x32xf32>
    %121 = arith.mulf %120, %119 : vector<8x32xf32>
    %122 = math.tanh %121 : vector<8x32xf32>
    %cst_46 = arith.constant 5.000000e-01 : f32
    %123 = vector.broadcast %cst_46 : f32 to vector<8x32xf32>
    %124 = arith.mulf %123, %122 : vector<8x32xf32>
    %cst_47 = arith.constant 5.000000e-01 : f32
    %125 = vector.broadcast %cst_47 : f32 to vector<8x32xf32>
    %126 = arith.addf %124, %125 : vector<8x32xf32>
    %127 = vector.extract_strided_slice %118 {offsets = [0, 32], sizes = [8, 32], strides = [1, 1]} : vector<8x128xf32> to vector<8x32xf32>
    %cst_48 = arith.constant 5.000000e-01 : f32
    %128 = vector.broadcast %cst_48 : f32 to vector<8x32xf32>
    %129 = arith.mulf %128, %127 : vector<8x32xf32>
    %130 = math.tanh %129 : vector<8x32xf32>
    %cst_49 = arith.constant 5.000000e-01 : f32
    %131 = vector.broadcast %cst_49 : f32 to vector<8x32xf32>
    %132 = arith.mulf %131, %130 : vector<8x32xf32>
    %cst_50 = arith.constant 5.000000e-01 : f32
    %133 = vector.broadcast %cst_50 : f32 to vector<8x32xf32>
    %134 = arith.addf %132, %133 : vector<8x32xf32>
    %135 = vector.extract_strided_slice %118 {offsets = [0, 64], sizes = [8, 32], strides = [1, 1]} : vector<8x128xf32> to vector<8x32xf32>
    %136 = math.tanh %135 : vector<8x32xf32>
    %137 = vector.extract_strided_slice %118 {offsets = [0, 96], sizes = [8, 32], strides = [1, 1]} : vector<8x128xf32> to vector<8x32xf32>
    %cst_51 = arith.constant 5.000000e-01 : f32
    %138 = vector.broadcast %cst_51 : f32 to vector<8x32xf32>
    %139 = arith.mulf %138, %137 : vector<8x32xf32>
    %140 = math.tanh %139 : vector<8x32xf32>
    %cst_52 = arith.constant 5.000000e-01 : f32
    %141 = vector.broadcast %cst_52 : f32 to vector<8x32xf32>
    %142 = arith.mulf %141, %140 : vector<8x32xf32>
    %cst_53 = arith.constant 5.000000e-01 : f32
    %143 = vector.broadcast %cst_53 : f32 to vector<8x32xf32>
    %144 = arith.addf %142, %143 : vector<8x32xf32>
    %145 = arith.mulf %134, %111 : vector<8x32xf32>
    %146 = arith.mulf %126, %136 : vector<8x32xf32>
    %147 = arith.addf %145, %146 : vector<8x32xf32>
    %148 = math.tanh %147 : vector<8x32xf32>
    %149 = arith.mulf %144, %148 : vector<8x32xf32>
    %c4_i32 = arith.constant 4 : i32
    %cst_54 = arith.constant dense<0.000000e+00> : vector<8x128xf32>
    %150 = tpu.matmul %149, %3, %cst_54 {dimension_numbers = #tpu.dot_dimension_numbers<[1], [0], [0], [1], [0, 0, 1, 1], [], []>} : vector<8x32xf32>, vector<32x128xf32>, vector<8x128xf32> -> vector<8x128xf32>
    %151 = arith.index_cast %c4_i32 : i32 to index
    %c0_55 = arith.constant 0 : index
    %c0_56 = arith.constant 0 : index
    %152 = vector.load %arg1[%151, %c0_55, %c0_56] : memref<8x8x128xf32, #tpu.memory_space<vmem>>, vector<1x8x128xf32>
    %153 = vector.shape_cast %152 : vector<1x8x128xf32> to vector<8x128xf32>
    %154 = arith.addf %150, %153 : vector<8x128xf32>
    %155 = vector.extract_strided_slice %154 {offsets = [0, 0], sizes = [8, 32], strides = [1, 1]} : vector<8x128xf32> to vector<8x32xf32>
    %cst_57 = arith.constant 5.000000e-01 : f32
    %156 = vector.broadcast %cst_57 : f32 to vector<8x32xf32>
    %157 = arith.mulf %156, %155 : vector<8x32xf32>
    %158 = math.tanh %157 : vector<8x32xf32>
    %cst_58 = arith.constant 5.000000e-01 : f32
    %159 = vector.broadcast %cst_58 : f32 to vector<8x32xf32>
    %160 = arith.mulf %159, %158 : vector<8x32xf32>
    %cst_59 = arith.constant 5.000000e-01 : f32
    %161 = vector.broadcast %cst_59 : f32 to vector<8x32xf32>
    %162 = arith.addf %160, %161 : vector<8x32xf32>
    %163 = vector.extract_strided_slice %154 {offsets = [0, 32], sizes = [8, 32], strides = [1, 1]} : vector<8x128xf32> to vector<8x32xf32>
    %cst_60 = arith.constant 5.000000e-01 : f32
    %164 = vector.broadcast %cst_60 : f32 to vector<8x32xf32>
    %165 = arith.mulf %164, %163 : vector<8x32xf32>
    %166 = math.tanh %165 : vector<8x32xf32>
    %cst_61 = arith.constant 5.000000e-01 : f32
    %167 = vector.broadcast %cst_61 : f32 to vector<8x32xf32>
    %168 = arith.mulf %167, %166 : vector<8x32xf32>
    %cst_62 = arith.constant 5.000000e-01 : f32
    %169 = vector.broadcast %cst_62 : f32 to vector<8x32xf32>
    %170 = arith.addf %168, %169 : vector<8x32xf32>
    %171 = vector.extract_strided_slice %154 {offsets = [0, 64], sizes = [8, 32], strides = [1, 1]} : vector<8x128xf32> to vector<8x32xf32>
    %172 = math.tanh %171 : vector<8x32xf32>
    %173 = vector.extract_strided_slice %154 {offsets = [0, 96], sizes = [8, 32], strides = [1, 1]} : vector<8x128xf32> to vector<8x32xf32>
    %cst_63 = arith.constant 5.000000e-01 : f32
    %174 = vector.broadcast %cst_63 : f32 to vector<8x32xf32>
    %175 = arith.mulf %174, %173 : vector<8x32xf32>
    %176 = math.tanh %175 : vector<8x32xf32>
    %cst_64 = arith.constant 5.000000e-01 : f32
    %177 = vector.broadcast %cst_64 : f32 to vector<8x32xf32>
    %178 = arith.mulf %177, %176 : vector<8x32xf32>
    %cst_65 = arith.constant 5.000000e-01 : f32
    %179 = vector.broadcast %cst_65 : f32 to vector<8x32xf32>
    %180 = arith.addf %178, %179 : vector<8x32xf32>
    %181 = arith.mulf %170, %147 : vector<8x32xf32>
    %182 = arith.mulf %162, %172 : vector<8x32xf32>
    %183 = arith.addf %181, %182 : vector<8x32xf32>
    %184 = math.tanh %183 : vector<8x32xf32>
    %185 = arith.mulf %180, %184 : vector<8x32xf32>
    %c5_i32 = arith.constant 5 : i32
    %cst_66 = arith.constant dense<0.000000e+00> : vector<8x128xf32>
    %186 = tpu.matmul %185, %3, %cst_66 {dimension_numbers = #tpu.dot_dimension_numbers<[1], [0], [0], [1], [0, 0, 1, 1], [], []>} : vector<8x32xf32>, vector<32x128xf32>, vector<8x128xf32> -> vector<8x128xf32>
    %187 = arith.index_cast %c5_i32 : i32 to index
    %c0_67 = arith.constant 0 : index
    %c0_68 = arith.constant 0 : index
    %188 = vector.load %arg1[%187, %c0_67, %c0_68] : memref<8x8x128xf32, #tpu.memory_space<vmem>>, vector<1x8x128xf32>
    %189 = vector.shape_cast %188 : vector<1x8x128xf32> to vector<8x128xf32>
    %190 = arith.addf %186, %189 : vector<8x128xf32>
    %191 = vector.extract_strided_slice %190 {offsets = [0, 0], sizes = [8, 32], strides = [1, 1]} : vector<8x128xf32> to vector<8x32xf32>
    %cst_69 = arith.constant 5.000000e-01 : f32
    %192 = vector.broadcast %cst_69 : f32 to vector<8x32xf32>
    %193 = arith.mulf %192, %191 : vector<8x32xf32>
    %194 = math.tanh %193 : vector<8x32xf32>
    %cst_70 = arith.constant 5.000000e-01 : f32
    %195 = vector.broadcast %cst_70 : f32 to vector<8x32xf32>
    %196 = arith.mulf %195, %194 : vector<8x32xf32>
    %cst_71 = arith.constant 5.000000e-01 : f32
    %197 = vector.broadcast %cst_71 : f32 to vector<8x32xf32>
    %198 = arith.addf %196, %197 : vector<8x32xf32>
    %199 = vector.extract_strided_slice %190 {offsets = [0, 32], sizes = [8, 32], strides = [1, 1]} : vector<8x128xf32> to vector<8x32xf32>
    %cst_72 = arith.constant 5.000000e-01 : f32
    %200 = vector.broadcast %cst_72 : f32 to vector<8x32xf32>
    %201 = arith.mulf %200, %199 : vector<8x32xf32>
    %202 = math.tanh %201 : vector<8x32xf32>
    %cst_73 = arith.constant 5.000000e-01 : f32
    %203 = vector.broadcast %cst_73 : f32 to vector<8x32xf32>
    %204 = arith.mulf %203, %202 : vector<8x32xf32>
    %cst_74 = arith.constant 5.000000e-01 : f32
    %205 = vector.broadcast %cst_74 : f32 to vector<8x32xf32>
    %206 = arith.addf %204, %205 : vector<8x32xf32>
    %207 = vector.extract_strided_slice %190 {offsets = [0, 64], sizes = [8, 32], strides = [1, 1]} : vector<8x128xf32> to vector<8x32xf32>
    %208 = math.tanh %207 : vector<8x32xf32>
    %209 = vector.extract_strided_slice %190 {offsets = [0, 96], sizes = [8, 32], strides = [1, 1]} : vector<8x128xf32> to vector<8x32xf32>
    %cst_75 = arith.constant 5.000000e-01 : f32
    %210 = vector.broadcast %cst_75 : f32 to vector<8x32xf32>
    %211 = arith.mulf %210, %209 : vector<8x32xf32>
    %212 = math.tanh %211 : vector<8x32xf32>
    %cst_76 = arith.constant 5.000000e-01 : f32
    %213 = vector.broadcast %cst_76 : f32 to vector<8x32xf32>
    %214 = arith.mulf %213, %212 : vector<8x32xf32>
    %cst_77 = arith.constant 5.000000e-01 : f32
    %215 = vector.broadcast %cst_77 : f32 to vector<8x32xf32>
    %216 = arith.addf %214, %215 : vector<8x32xf32>
    %217 = arith.mulf %206, %183 : vector<8x32xf32>
    %218 = arith.mulf %198, %208 : vector<8x32xf32>
    %219 = arith.addf %217, %218 : vector<8x32xf32>
    %220 = math.tanh %219 : vector<8x32xf32>
    %221 = arith.mulf %216, %220 : vector<8x32xf32>
    %c6_i32 = arith.constant 6 : i32
    %cst_78 = arith.constant dense<0.000000e+00> : vector<8x128xf32>
    %222 = tpu.matmul %221, %3, %cst_78 {dimension_numbers = #tpu.dot_dimension_numbers<[1], [0], [0], [1], [0, 0, 1, 1], [], []>} : vector<8x32xf32>, vector<32x128xf32>, vector<8x128xf32> -> vector<8x128xf32>
    %223 = arith.index_cast %c6_i32 : i32 to index
    %c0_79 = arith.constant 0 : index
    %c0_80 = arith.constant 0 : index
    %224 = vector.load %arg1[%223, %c0_79, %c0_80] : memref<8x8x128xf32, #tpu.memory_space<vmem>>, vector<1x8x128xf32>
    %225 = vector.shape_cast %224 : vector<1x8x128xf32> to vector<8x128xf32>
    %226 = arith.addf %222, %225 : vector<8x128xf32>
    %227 = vector.extract_strided_slice %226 {offsets = [0, 0], sizes = [8, 32], strides = [1, 1]} : vector<8x128xf32> to vector<8x32xf32>
    %cst_81 = arith.constant 5.000000e-01 : f32
    %228 = vector.broadcast %cst_81 : f32 to vector<8x32xf32>
    %229 = arith.mulf %228, %227 : vector<8x32xf32>
    %230 = math.tanh %229 : vector<8x32xf32>
    %cst_82 = arith.constant 5.000000e-01 : f32
    %231 = vector.broadcast %cst_82 : f32 to vector<8x32xf32>
    %232 = arith.mulf %231, %230 : vector<8x32xf32>
    %cst_83 = arith.constant 5.000000e-01 : f32
    %233 = vector.broadcast %cst_83 : f32 to vector<8x32xf32>
    %234 = arith.addf %232, %233 : vector<8x32xf32>
    %235 = vector.extract_strided_slice %226 {offsets = [0, 32], sizes = [8, 32], strides = [1, 1]} : vector<8x128xf32> to vector<8x32xf32>
    %cst_84 = arith.constant 5.000000e-01 : f32
    %236 = vector.broadcast %cst_84 : f32 to vector<8x32xf32>
    %237 = arith.mulf %236, %235 : vector<8x32xf32>
    %238 = math.tanh %237 : vector<8x32xf32>
    %cst_85 = arith.constant 5.000000e-01 : f32
    %239 = vector.broadcast %cst_85 : f32 to vector<8x32xf32>
    %240 = arith.mulf %239, %238 : vector<8x32xf32>
    %cst_86 = arith.constant 5.000000e-01 : f32
    %241 = vector.broadcast %cst_86 : f32 to vector<8x32xf32>
    %242 = arith.addf %240, %241 : vector<8x32xf32>
    %243 = vector.extract_strided_slice %226 {offsets = [0, 64], sizes = [8, 32], strides = [1, 1]} : vector<8x128xf32> to vector<8x32xf32>
    %244 = math.tanh %243 : vector<8x32xf32>
    %245 = vector.extract_strided_slice %226 {offsets = [0, 96], sizes = [8, 32], strides = [1, 1]} : vector<8x128xf32> to vector<8x32xf32>
    %cst_87 = arith.constant 5.000000e-01 : f32
    %246 = vector.broadcast %cst_87 : f32 to vector<8x32xf32>
    %247 = arith.mulf %246, %245 : vector<8x32xf32>
    %248 = math.tanh %247 : vector<8x32xf32>
    %cst_88 = arith.constant 5.000000e-01 : f32
    %249 = vector.broadcast %cst_88 : f32 to vector<8x32xf32>
    %250 = arith.mulf %249, %248 : vector<8x32xf32>
    %cst_89 = arith.constant 5.000000e-01 : f32
    %251 = vector.broadcast %cst_89 : f32 to vector<8x32xf32>
    %252 = arith.addf %250, %251 : vector<8x32xf32>
    %253 = arith.mulf %242, %219 : vector<8x32xf32>
    %254 = arith.mulf %234, %244 : vector<8x32xf32>
    %255 = arith.addf %253, %254 : vector<8x32xf32>
    %256 = math.tanh %255 : vector<8x32xf32>
    %257 = arith.mulf %252, %256 : vector<8x32xf32>
    %c7_i32 = arith.constant 7 : i32
    %cst_90 = arith.constant dense<0.000000e+00> : vector<8x128xf32>
    %258 = tpu.matmul %257, %3, %cst_90 {dimension_numbers = #tpu.dot_dimension_numbers<[1], [0], [0], [1], [0, 0, 1, 1], [], []>} : vector<8x32xf32>, vector<32x128xf32>, vector<8x128xf32> -> vector<8x128xf32>
    %259 = arith.index_cast %c7_i32 : i32 to index
    %c0_91 = arith.constant 0 : index
    %c0_92 = arith.constant 0 : index
    %260 = vector.load %arg1[%259, %c0_91, %c0_92] : memref<8x8x128xf32, #tpu.memory_space<vmem>>, vector<1x8x128xf32>
    %261 = vector.shape_cast %260 : vector<1x8x128xf32> to vector<8x128xf32>
    %262 = arith.addf %258, %261 : vector<8x128xf32>
    %263 = vector.extract_strided_slice %262 {offsets = [0, 0], sizes = [8, 32], strides = [1, 1]} : vector<8x128xf32> to vector<8x32xf32>
    %cst_93 = arith.constant 5.000000e-01 : f32
    %264 = vector.broadcast %cst_93 : f32 to vector<8x32xf32>
    %265 = arith.mulf %264, %263 : vector<8x32xf32>
    %266 = math.tanh %265 : vector<8x32xf32>
    %cst_94 = arith.constant 5.000000e-01 : f32
    %267 = vector.broadcast %cst_94 : f32 to vector<8x32xf32>
    %268 = arith.mulf %267, %266 : vector<8x32xf32>
    %cst_95 = arith.constant 5.000000e-01 : f32
    %269 = vector.broadcast %cst_95 : f32 to vector<8x32xf32>
    %270 = arith.addf %268, %269 : vector<8x32xf32>
    %271 = vector.extract_strided_slice %262 {offsets = [0, 32], sizes = [8, 32], strides = [1, 1]} : vector<8x128xf32> to vector<8x32xf32>
    %cst_96 = arith.constant 5.000000e-01 : f32
    %272 = vector.broadcast %cst_96 : f32 to vector<8x32xf32>
    %273 = arith.mulf %272, %271 : vector<8x32xf32>
    %274 = math.tanh %273 : vector<8x32xf32>
    %cst_97 = arith.constant 5.000000e-01 : f32
    %275 = vector.broadcast %cst_97 : f32 to vector<8x32xf32>
    %276 = arith.mulf %275, %274 : vector<8x32xf32>
    %cst_98 = arith.constant 5.000000e-01 : f32
    %277 = vector.broadcast %cst_98 : f32 to vector<8x32xf32>
    %278 = arith.addf %276, %277 : vector<8x32xf32>
    %279 = vector.extract_strided_slice %262 {offsets = [0, 64], sizes = [8, 32], strides = [1, 1]} : vector<8x128xf32> to vector<8x32xf32>
    %280 = math.tanh %279 : vector<8x32xf32>
    %281 = vector.extract_strided_slice %262 {offsets = [0, 96], sizes = [8, 32], strides = [1, 1]} : vector<8x128xf32> to vector<8x32xf32>
    %cst_99 = arith.constant 5.000000e-01 : f32
    %282 = vector.broadcast %cst_99 : f32 to vector<8x32xf32>
    %283 = arith.mulf %282, %281 : vector<8x32xf32>
    %284 = math.tanh %283 : vector<8x32xf32>
    %cst_100 = arith.constant 5.000000e-01 : f32
    %285 = vector.broadcast %cst_100 : f32 to vector<8x32xf32>
    %286 = arith.mulf %285, %284 : vector<8x32xf32>
    %cst_101 = arith.constant 5.000000e-01 : f32
    %287 = vector.broadcast %cst_101 : f32 to vector<8x32xf32>
    %288 = arith.addf %286, %287 : vector<8x32xf32>
    %289 = arith.mulf %278, %255 : vector<8x32xf32>
    %290 = arith.mulf %270, %280 : vector<8x32xf32>
    %291 = arith.addf %289, %290 : vector<8x32xf32>
    %292 = math.tanh %291 : vector<8x32xf32>
    %293 = arith.mulf %288, %292 : vector<8x32xf32>
    %c8_i32 = arith.constant 8 : i32
    %c0_102 = arith.constant 0 : index
    %c0_103 = arith.constant 0 : index
    %294 = vector.load %arg7[%c0_102, %c0_103] : memref<8x32xf32, #tpu.memory_space<vmem>>, vector<8x32xf32>
    tpu.vector_store %arg7[%c0_102, %c0_103], %293 {strides = array<i32>} : memref<8x32xf32, #tpu.memory_space<vmem>>, vector<8x32xf32>,
    %c0_104 = arith.constant 0 : index
    %c0_105 = arith.constant 0 : index
    %295 = vector.load %arg8[%c0_104, %c0_105] : memref<8x32xf32, #tpu.memory_space<vmem>>, vector<8x32xf32>
    tpu.vector_store %arg8[%c0_104, %c0_105], %291 {strides = array<i32>} : memref<8x32xf32, #tpu.memory_space<vmem>>, vector<8x32xf32>,
    %c0_i32_106 = arith.constant 0 : i32
    %296 = arith.cmpi eq, %arg0, %c0_i32_106 : i32
    %297 = arith.extui %296 : i1 to i32
    %c0_i32_107 = arith.constant 0 : i32
    %298 = arith.cmpi ne, %297, %c0_i32_107 : i32
    scf.if %298 {
      %c0_108 = arith.constant 0 : index
      %c0_109 = arith.constant 0 : index
      %299 = vector.load %arg4[%c0_108, %c0_109] : memref<32x64xf32, #tpu.memory_space<vmem>>, vector<32x64xf32>
      %cst_110 = arith.constant dense<0.000000e+00> : vector<8x64xf32>
      %300 = tpu.matmul %293, %299, %cst_110 {dimension_numbers = #tpu.dot_dimension_numbers<[1], [0], [0], [1], [0, 0, 1, 1], [], []>} : vector<8x32xf32>, vector<32x64xf32>, vector<8x64xf32> -> vector<8x64xf32>
      %c0_111 = arith.constant 0 : index
      %c0_112 = arith.constant 0 : index
      %301 = vector.load %arg5[%c0_111, %c0_112] : memref<1x64xf32, #tpu.memory_space<vmem>>, vector<1x64xf32>
      %302 = vector.broadcast %301 : vector<1x64xf32> to vector<8x64xf32>
      %303 = arith.addf %300, %302 : vector<8x64xf32>
      %304 = tpu.concatenate %303, %293, %291 in 1 : vector<8x64xf32>, vector<8x32xf32>, vector<8x32xf32> -> vector<8x128xf32>
      %c0_113 = arith.constant 0 : index
      %c0_114 = arith.constant 0 : index
      %305 = vector.load %arg6[%c0_113, %c0_114] : memref<8x128xf32, #tpu.memory_space<vmem>>, vector<8x128xf32>
      tpu.vector_store %arg6[%c0_113, %c0_114], %304 {strides = array<i32>} : memref<8x128xf32, #tpu.memory_space<vmem>>, vector<8x128xf32>,
    } else {
    }
    return
  }
  func.func @transform_0(%arg0: i32) -> (i32, i32, i32) {
    %c0_i32 = arith.constant 0 : i32
    %c0_i32_0 = arith.constant 0 : i32
    %c0_i32_1 = arith.constant 0 : i32
    return %arg0, %c0_i32, %c0_i32_0 : i32, i32, i32
  }
  func.func @transform_1(%arg0: i32) -> (i32, i32, i32) {
    %c0_i32 = arith.constant 0 : i32
    %c0_i32_0 = arith.constant 0 : i32
    %c0_i32_1 = arith.constant 0 : i32
    %c0_i32_2 = arith.constant 0 : i32
    return %c0_i32, %c0_i32_0, %c0_i32_1 : i32, i32, i32
  }
  func.func @transform_2(%arg0: i32) -> (i32, i32) {
    %c0_i32 = arith.constant 0 : i32
    %c0_i32_0 = arith.constant 0 : i32
    %c0_i32_1 = arith.constant 0 : i32
    return %c0_i32, %c0_i32_0 : i32, i32
  }
  func.func @transform_3(%arg0: i32) -> (i32, i32) {
    %c0_i32 = arith.constant 0 : i32
    %c0_i32_0 = arith.constant 0 : i32
    %c0_i32_1 = arith.constant 0 : i32
    return %c0_i32, %c0_i32_0 : i32, i32
  }
  func.func @transform_4(%arg0: i32) -> (i32, i32) {
    %c0_i32 = arith.constant 0 : i32
    %c0_i32_0 = arith.constant 0 : i32
    %c0_i32_1 = arith.constant 0 : i32
    return %c0_i32, %c0_i32_0 : i32, i32
  }
  func.func @transform_5(%arg0: i32) -> (i32, i32) {
    %c0_i32 = arith.constant 0 : i32
    %c0_i32_0 = arith.constant 0 : i32
    %c0_i32_1 = arith.constant 0 : i32
    return %c0_i32, %c0_i32_0 : i32, i32
  }
}

</mosaic_0001>

<llo_original>
// kernel: _lambda_.1
$region0: #{_lambda_.1}
  #allocation0 [shape = 'u32[]', space=smem, size = 0x4, offset = 0x4, fixed_abs, tag = 'smem constant byte address 0x4 - core index']
  #allocation1 [shape = 'u32[144,128]{1,0:T(1,128)}', space=vmem, size = 0x12000, scoped, tag = 'internal scratch']
  #allocation2 [shape = 'f32[8,32]{1,0:T(8,128)}', space=vmem, size = 0x1000, scoped, tag = 'scratch operand']
  #allocation3 [shape = 'f32[8,32]{1,0:T(8,128)}', space=vmem, size = 0x1000, scoped, tag = 'scratch operand']
  %s0 = inlined_call_operand.vmem [shape: f32[8,8,128], index: 0, kind: input, shape index: {}]
  %s1 = inlined_call_operand.vmem [shape: f32[2,8,32], index: 1, kind: input, shape index: {}]
  %s2 = inlined_call_operand.vmem [shape: f32[32,128], index: 2, kind: input, shape index: {}]
  %s3 = inlined_call_operand.vmem [shape: f32[32,64], index: 3, kind: input, shape index: {}]
  %s4 = inlined_call_operand.vmem [shape: f32[1,64], index: 4, kind: input, shape index: {}]
  %s5 = inlined_call_operand.vmem [shape: f32[8,128], index: 5, kind: output, shape index: {}]
  %s6 = sld [smem:[#allocation0]]
  $region38: #{_lambda_.1} parent=0
    _
  %s8 = ssub.s32 1, %s6
  %s9 = scalar_select 0, %s8, %s6
  // Predicated region
  $region2: #{_lambda_.1} parent=0 // pred_check
    _
  $region3: #{_lambda_.1} parent=0 // pred_check_branch
    %11 = sbr.rel (0) target = $region5
  $region4: #{_lambda_.1} parent=0 // pred_region
    _
  $region5: #{_lambda_.1} parent=0 // pred_fallthru
    _
  // Predicated region
  $region6: #{_lambda_.1} parent=0 // pred_check
    _
  $region7: #{_lambda_.1} parent=0 // pred_check_branch
    %13 = sbr.rel (0) target = $region9
  $region8: #{_lambda_.1} parent=0 // pred_region
    _
  $region9: #{_lambda_.1} parent=0 // pred_fallthru
    _
  // Predicated region
  $region10: #{_lambda_.1} parent=0 // pred_check
    _
  $region11: #{_lambda_.1} parent=0 // pred_check_branch
    %15 = sbr.rel (0) target = $region13
  $region12: #{_lambda_.1} parent=0 // pred_region
    _
  $region13: #{_lambda_.1} parent=0 // pred_fallthru
    _
  // Predicated region
  $region14: #{_lambda_.1} parent=0 // pred_check
    _
  $region15: #{_lambda_.1} parent=0 // pred_check_branch
    %17 = sbr.rel (0) target = $region17
  $region16: #{_lambda_.1} parent=0 // pred_region
    _
  $region17: #{_lambda_.1} parent=0 // pred_fallthru
    _
  // Predicated region
  $region18: #{_lambda_.1} parent=0 // pred_check
    _
  $region19: #{_lambda_.1} parent=0 // pred_check_branch
    %19 = sbr.rel (0) target = $region21
  $region20: #{_lambda_.1} parent=0 // pred_region
    _
  $region21: #{_lambda_.1} parent=0 // pred_fallthru
    _
  %p20 = scmp.eq.s32.totalorder 0, 0
  // Predicated region
  $region22: #{_lambda_.1} parent=0 // pred_check
    %p21 = pneg %p20
  $region23: #{_lambda_.1} parent=0 // pred_check_branch
    %23 = sbr.rel (%p21) target = $region25
  $region24: #{_lambda_.1} parent=0 // pred_region
    %v24 = vld [vmem:[%s1] sm:$0xff]
    %vm25 = vcmask 261120
    %26 = vst.msk [vmem:[#allocation2] sm:$0xff] %vm25, %v24
    %s27 = scalar_lea.vmem %s1, 8
    %v28 = vld [vmem:[%s27] sm:$0xff]
    %29 = vst.msk [vmem:[#allocation3] sm:$0xff] %vm25, %v28
  $region25: #{_lambda_.1} parent=0 // pred_fallthru
    _
  %v30 = vld [vmem:[%s2] sm:$0xff]
  %v31 = vld [vmem:[%s2 + $0x8] sm:$0xff]
  %v32 = vld [vmem:[%s2 + $0x10] sm:$0xff]
  %v33 = vld [vmem:[%s2 + $0x18] sm:$0xff]
  %v34 = vld [vmem:[#allocation2] sm:$0xff]
  %v35 = vld [vmem:[#allocation3] sm:$0xff]
  %v36 = vld [vmem:[%s0] sm:$0xff]
  %vm37 = vcmask 261120
  %v39 = vsel %vm37, %v34, 0
  %41 = vmatprep.subr.mxu0 0.0
  %42 = vmatpush1.msra.mxu0 %v30
  %43 = vmatprep.subr.mxu0 0.0
  %44 = vmatpush1.msra.mxu0 %v31
  %45 = vmatprep.subr.mxu0 0.0
  %46 = vmatpush1.msra.mxu0 %v32
  %47 = vmatprep.subr.mxu0 0.0
  %48 = vmatpush1.msra.mxu0 %v33
  %49 = vmatprep.subr.mxu0 0.0
  %50 = vmatpush1.msra.mxu0 0.0
  %51 = vmatprep.subr.mxu0 0.0
  %52 = vmatpush1.msra.mxu0 0.0
  %53 = vmatprep.subr.mxu0 0.0
  %54 = vmatpush1.msra.mxu0 0.0
  %55 = vmatprep.subr.mxu0 0.0
  %56 = vmatpush1.msra.mxu0 0.0
  %57 = vmatprep.subr.mxu0 0.0
  %58 = vmatpush1.msra.mxu0 0.0
  %59 = vmatprep.subr.mxu0 0.0
  %60 = vmatpush1.msra.mxu0 0.0
  %61 = vmatprep.subr.mxu0 0.0
  %62 = vmatpush1.msra.mxu0 0.0
  %63 = vmatprep.subr.mxu0 0.0
  %64 = vmatpush1.msra.mxu0 0.0
  %65 = vmatprep.subr.mxu0 0.0
  %66 = vmatpush1.msra.mxu0 0.0
  %67 = vmatprep.subr.mxu0 0.0
  %68 = vmatpush1.msra.mxu0 0.0
  %69 = vmatprep.subr.mxu0 0.0
  %70 = vmatpush1.msra.mxu0 0.0
  %71 = vmatprep.subr.mxu0 0.0
  %72 = vmatpush1.msra.mxu0 0.0
  %73 = vmatprep.subr.mxu0 0.0
  %74 = vmatpush1.msra.mxu0 0.0
  %75 = vmatprep.subr.mxu0 0.0
  %76 = vmatpush1.msra.mxu0 0.0
  %77 = vmatprep.subr.mxu0 0.0
  %78 = vmatpush1.msra.mxu0 0.0
  %79 = vmatprep.subr.mxu0 0.0
  %80 = vmatpush1.msra.mxu0 0.0
  %81 = vmatprep.subr.mxu0 0.0
  %82 = vmatpush1.msra.mxu0 0.0
  %83 = vmatprep.subr.mxu0 0.0
  %84 = vmatpush1.msra.mxu0 0.0
  %85 = vmatprep.subr.mxu0 0.0
  %86 = vmatpush1.msra.mxu0 0.0
  %87 = vmatprep.subr.mxu0 0.0
  %88 = vmatpush1.msra.mxu0 0.0
  %89 = vmatprep.subr.mxu0 0.0
  %90 = vmatpush1.msra.mxu0 0.0
  %91 = vmatprep.subr.mxu0 0.0
  %92 = vmatpush1.msra.mxu0 0.0
  %93 = vmatprep.subr.mxu0 0.0
  %94 = vmatpush1.msra.mxu0 0.0
  %95 = vmatprep.subr.mxu0 0.0
  %96 = vmatpush1.msra.mxu0 0.0
  %97 = vmatprep.subr.mxu0 0.0
  %98 = vmatpush1.msra.mxu0 0.0
  %99 = vmatprep.subr.mxu0 0.0
  %100 = vmatpush1.msra.mxu0 0.0
  %101 = vmatprep.subr.mxu0 0.0
  %102 = vmatpush1.msra.mxu0 0.0
  %103 = vmatprep.subr.mxu0 0.0
  %104 = vmatpush1.msra.mxu0 0.0
  %105 = vmatprep.mubr.f32.mxu0 0.0
  %106 = vmatmul.mubr.f32.gmra.mrb[0].mxu0 %v39
  %v107 = vpop.f32.mrb[0].mxu0
  %v108 = vadd.f32 %v36, %v107
  %v109 = vpop.f32.mrb[0].mxu0
  %110 = vdwg.mxu0
  %v111 = vmul.f32 %v108, 0.5
  %v112 = vtanh.pop %v111
  %v113 = vmul.f32 %v112, 0.5
  %v114 = vadd.f32 %v113, 0.5
  %v115 = vtanh.pop %v108
  %117 = vrot.lane.b32.xlu0 %v35, 32
  %v118 = vpop.permute.xlu0 %117
  %v120 = vmul.f32 %v114, %v118
  %122 = vrot.lane.b32.xlu0 %v115, 64
  %v123 = vpop.permute.xlu0 %122
  %v125 = vmul.f32 %v114, %v123
  %127 = vrot.lane.b32.xlu0 %v125, 32
  %v128 = vpop.permute.xlu0 %127
  %v130 = vadd.f32 %v120, %v128
  %v131 = vtanh.pop %v130
  %133 = vrot.lane.b32.xlu0 %v131, 64
  %v134 = vpop.permute.xlu0 %133
  %v136 = vmul.f32 %v114, %v134
  %s137 = scalar_lea.vmem %s0, 8
  %v138 = vld [vmem:[%s137] sm:$0xff]
  %140 = vrot.lane.b32.xlu0 %v136, 32
  %v141 = vpop.permute.xlu0 %140
  %v142 = vsel %vm37, %v141, 0
  %144 = vmatprep.subr.mxu0 0.0
  %145 = vmatpush1.msra.mxu0 %v30
  %146 = vmatprep.subr.mxu0 0.0
  %147 = vmatpush1.msra.mxu0 %v31
  %148 = vmatprep.subr.mxu0 0.0
  %149 = vmatpush1.msra.mxu0 %v32
  %150 = vmatprep.subr.mxu0 0.0
  %151 = vmatpush1.msra.mxu0 %v33
  %152 = vmatprep.subr.mxu0 0.0
  %153 = vmatpush1.msra.mxu0 0.0
  %154 = vmatprep.subr.mxu0 0.0
  %155 = vmatpush1.msra.mxu0 0.0
  %156 = vmatprep.subr.mxu0 0.0
  %157 = vmatpush1.msra.mxu0 0.0
  %158 = vmatprep.subr.mxu0 0.0
  %159 = vmatpush1.msra.mxu0 0.0
  %160 = vmatprep.subr.mxu0 0.0
  %161 = vmatpush1.msra.mxu0 0.0
  %162 = vmatprep.subr.mxu0 0.0
  %163 = vmatpush1.msra.mxu0 0.0
  %164 = vmatprep.subr.mxu0 0.0
  %165 = vmatpush1.msra.mxu0 0.0
  %166 = vmatprep.subr.mxu0 0.0
  %167 = vmatpush1.msra.mxu0 0.0
  %168 = vmatprep.subr.mxu0 0.0
  %169 = vmatpush1.msra.mxu0 0.0
  %170 = vmatprep.subr.mxu0 0.0
  %171 = vmatpush1.msra.mxu0 0.0
  %172 = vmatprep.subr.mxu0 0.0
  %173 = vmatpush1.msra.mxu0 0.0
  %174 = vmatprep.subr.mxu0 0.0
  %175 = vmatpush1.msra.mxu0 0.0
  %176 = vmatprep.subr.mxu0 0.0
  %177 = vmatpush1.msra.mxu0 0.0
  %178 = vmatprep.subr.mxu0 0.0
  %179 = vmatpush1.msra.mxu0 0.0
  %180 = vmatprep.subr.mxu0 0.0
  %181 = vmatpush1.msra.mxu0 0.0
  %182 = vmatprep.subr.mxu0 0.0
  %183 = vmatpush1.msra.mxu0 0.0
  %184 = vmatprep.subr.mxu0 0.0
  %185 = vmatpush1.msra.mxu0 0.0
  %186 = vmatprep.subr.mxu0 0.0
  %187 = vmatpush1.msra.mxu0 0.0
  %188 = vmatprep.subr.mxu0 0.0
  %189 = vmatpush1.msra.mxu0 0.0
  %190 = vmatprep.subr.mxu0 0.0
  %191 = vmatpush1.msra.mxu0 0.0
  %192 = vmatprep.subr.mxu0 0.0
  %193 = vmatpush1.msra.mxu0 0.0
  %194 = vmatprep.subr.mxu0 0.0
  %195 = vmatpush1.msra.mxu0 0.0
  %196 = vmatprep.subr.mxu0 0.0
  %197 = vmatpush1.msra.mxu0 0.0
  %198 = vmatprep.subr.mxu0 0.0
  %199 = vmatpush1.msra.mxu0 0.0
  %200 = vmatprep.subr.mxu0 0.0
  %201 = vmatpush1.msra.mxu0 0.0
  %202 = vmatprep.subr.mxu0 0.0
  %203 = vmatpush1.msra.mxu0 0.0
  %204 = vmatprep.subr.mxu0 0.0
  %205 = vmatpush1.msra.mxu0 0.0
  %206 = vmatprep.subr.mxu0 0.0
  %207 = vmatpush1.msra.mxu0 0.0
  %208 = vmatprep.mubr.f32.mxu0 0.0
  %209 = vmatmul.mubr.f32.gmra.mrb[0].mxu0 %v142
  %v210 = vpop.f32.mrb[0].mxu0
  %v211 = vadd.f32 %v138, %v210
  %v212 = vpop.f32.mrb[0].mxu0
  %213 = vdwg.mxu0
  %v214 = vmul.f32 %v211, 0.5
  %v215 = vtanh.pop %v214
  %v216 = vmul.f32 %v215, 0.5
  %v217 = vadd.f32 %v216, 0.5
  %v218 = vtanh.pop %v211
  %v219 = vmul.f32 %v217, %v130
  %221 = vrot.lane.b32.xlu0 %v218, 64
  %v222 = vpop.permute.xlu0 %221
  %v224 = vmul.f32 %v217, %v222
  %226 = vrot.lane.b32.xlu0 %v224, 32
  %v227 = vpop.permute.xlu0 %226
  %v229 = vadd.f32 %v219, %v227
  %v230 = vtanh.pop %v229
  %232 = vrot.lane.b32.xlu0 %v230, 64
  %v233 = vpop.permute.xlu0 %232
  %v235 = vmul.f32 %v217, %v233
  %s236 = scalar_lea.vmem %s0, 16
  %v237 = vld [vmem:[%s236] sm:$0xff]
  %239 = vrot.lane.b32.xlu0 %v235, 32
  %v240 = vpop.permute.xlu0 %239
  %v241 = vsel %vm37, %v240, 0
  %243 = vmatprep.subr.mxu0 0.0
  %244 = vmatpush1.msra.mxu0 %v30
  %245 = vmatprep.subr.mxu0 0.0
  %246 = vmatpush1.msra.mxu0 %v31
  %247 = vmatprep.subr.mxu0 0.0
  %248 = vmatpush1.msra.mxu0 %v32
  %249 = vmatprep.subr.mxu0 0.0
  %250 = vmatpush1.msra.mxu0 %v33
  %251 = vmatprep.subr.mxu0 0.0
  %252 = vmatpush1.msra.mxu0 0.0
  %253 = vmatprep.subr.mxu0 0.0
  %254 = vmatpush1.msra.mxu0 0.0
  %255 = vmatprep.subr.mxu0 0.0
  %256 = vmatpush1.msra.mxu0 0.0
  %257 = vmatprep.subr.mxu0 0.0
  %258 = vmatpush1.msra.mxu0 0.0
  %259 = vmatprep.subr.mxu0 0.0
  %260 = vmatpush1.msra.mxu0 0.0
  %261 = vmatprep.subr.mxu0 0.0
  %262 = vmatpush1.msra.mxu0 0.0
  %263 = vmatprep.subr.mxu0 0.0
  %264 = vmatpush1.msra.mxu0 0.0
  %265 = vmatprep.subr.mxu0 0.0
  %266 = vmatpush1.msra.mxu0 0.0
  %267 = vmatprep.subr.mxu0 0.0
  %268 = vmatpush1.msra.mxu0 0.0
  %269 = vmatprep.subr.mxu0 0.0
  %270 = vmatpush1.msra.mxu0 0.0
  %271 = vmatprep.subr.mxu0 0.0
  %272 = vmatpush1.msra.mxu0 0.0
  %273 = vmatprep.subr.mxu0 0.0
  %274 = vmatpush1.msra.mxu0 0.0
  %275 = vmatprep.subr.mxu0 0.0
  %276 = vmatpush1.msra.mxu0 0.0
  %277 = vmatprep.subr.mxu0 0.0
  %278 = vmatpush1.msra.mxu0 0.0
  %279 = vmatprep.subr.mxu0 0.0
  %280 = vmatpush1.msra.mxu0 0.0
  %281 = vmatprep.subr.mxu0 0.0
  %282 = vmatpush1.msra.mxu0 0.0
  %283 = vmatprep.subr.mxu0 0.0
  %284 = vmatpush1.msra.mxu0 0.0
  %285 = vmatprep.subr.mxu0 0.0
  %286 = vmatpush1.msra.mxu0 0.0
  %287 = vmatprep.subr.mxu0 0.0
  %288 = vmatpush1.msra.mxu0 0.0
  %289 = vmatprep.subr.mxu0 0.0
  %290 = vmatpush1.msra.mxu0 0.0
  %291 = vmatprep.subr.mxu0 0.0
  %292 = vmatpush1.msra.mxu0 0.0
  %293 = vmatprep.subr.mxu0 0.0
  %294 = vmatpush1.msra.mxu0 0.0
  %295 = vmatprep.subr.mxu0 0.0
  %296 = vmatpush1.msra.mxu0 0.0
  %297 = vmatprep.subr.mxu0 0.0
  %298 = vmatpush1.msra.mxu0 0.0
  %299 = vmatprep.subr.mxu0 0.0
  %300 = vmatpush1.msra.mxu0 0.0
  %301 = vmatprep.subr.mxu0 0.0
  %302 = vmatpush1.msra.mxu0 0.0
  %303 = vmatprep.subr.mxu0 0.0
  %304 = vmatpush1.msra.mxu0 0.0
  %305 = vmatprep.subr.mxu0 0.0
  %306 = vmatpush1.msra.mxu0 0.0
  %307 = vmatprep.mubr.f32.mxu0 0.0
  %308 = vmatmul.mubr.f32.gmra.mrb[0].mxu0 %v241
  %v309 = vpop.f32.mrb[0].mxu0
  %v310 = vadd.f32 %v237, %v309
  %v311 = vpop.f32.mrb[0].mxu0
  %312 = vdwg.mxu0
  %v313 = vmul.f32 %v310, 0.5
  %v314 = vtanh.pop %v313
  %v315 = vmul.f32 %v314, 0.5
  %v316 = vadd.f32 %v315, 0.5
  %v317 = vtanh.pop %v310
  %v318 = vmul.f32 %v316, %v229
  %320 = vrot.lane.b32.xlu0 %v317, 64
  %v321 = vpop.permute.xlu0 %320
  %v323 = vmul.f32 %v316, %v321
  %325 = vrot.lane.b32.xlu0 %v323, 32
  %v326 = vpop.permute.xlu0 %325
  %v328 = vadd.f32 %v318, %v326
  %v329 = vtanh.pop %v328
  %331 = vrot.lane.b32.xlu0 %v329, 64
  %v332 = vpop.permute.xlu0 %331
  %v334 = vmul.f32 %v316, %v332
  %s335 = scalar_lea.vmem %s0, 24
  %v336 = vld [vmem:[%s335] sm:$0xff]
  %338 = vrot.lane.b32.xlu0 %v334, 32
  %v339 = vpop.permute.xlu0 %338
  %v340 = vsel %vm37, %v339, 0
  %342 = vmatprep.subr.mxu0 0.0
  %343 = vmatpush1.msra.mxu0 %v30
  %344 = vmatprep.subr.mxu0 0.0
  %345 = vmatpush1.msra.mxu0 %v31
  %346 = vmatprep.subr.mxu0 0.0
  %347 = vmatpush1.msra.mxu0 %v32
  %348 = vmatprep.subr.mxu0 0.0
  %349 = vmatpush1.msra.mxu0 %v33
  %350 = vmatprep.subr.mxu0 0.0
  %351 = vmatpush1.msra.mxu0 0.0
  %352 = vmatprep.subr.mxu0 0.0
  %353 = vmatpush1.msra.mxu0 0.0
  %354 = vmatprep.subr.mxu0 0.0
  %355 = vmatpush1.msra.mxu0 0.0
  %356 = vmatprep.subr.mxu0 0.0
  %357 = vmatpush1.msra.mxu0 0.0
  %358 = vmatprep.subr.mxu0 0.0
  %359 = vmatpush1.msra.mxu0 0.0
  %360 = vmatprep.subr.mxu0 0.0
  %361 = vmatpush1.msra.mxu0 0.0
  %362 = vmatprep.subr.mxu0 0.0
  %363 = vmatpush1.msra.mxu0 0.0
  %364 = vmatprep.subr.mxu0 0.0
  %365 = vmatpush1.msra.mxu0 0.0
  %366 = vmatprep.subr.mxu0 0.0
  %367 = vmatpush1.msra.mxu0 0.0
  %368 = vmatprep.subr.mxu0 0.0
  %369 = vmatpush1.msra.mxu0 0.0
  %370 = vmatprep.subr.mxu0 0.0
  %371 = vmatpush1.msra.mxu0 0.0
  %372 = vmatprep.subr.mxu0 0.0
  %373 = vmatpush1.msra.mxu0 0.0
  %374 = vmatprep.subr.mxu0 0.0
  %375 = vmatpush1.msra.mxu0 0.0
  %376 = vmatprep.subr.mxu0 0.0
  %377 = vmatpush1.msra.mxu0 0.0
  %378 = vmatprep.subr.mxu0 0.0
  %379 = vmatpush1.msra.mxu0 0.0
  %380 = vmatprep.subr.mxu0 0.0
  %381 = vmatpush1.msra.mxu0 0.0
  %382 = vmatprep.subr.mxu0 0.0
  %383 = vmatpush1.msra.mxu0 0.0
  %384 = vmatprep.subr.mxu0 0.0
  %385 = vmatpush1.msra.mxu0 0.0
  %386 = vmatprep.subr.mxu0 0.0
  %387 = vmatpush1.msra.mxu0 0.0
  %388 = vmatprep.subr.mxu0 0.0
  %389 = vmatpush1.msra.mxu0 0.0
  %390 = vmatprep.subr.mxu0 0.0
  %391 = vmatpush1.msra.mxu0 0.0
  %392 = vmatprep.subr.mxu0 0.0
  %393 = vmatpush1.msra.mxu0 0.0
  %394 = vmatprep.subr.mxu0 0.0
  %395 = vmatpush1.msra.mxu0 0.0
  %396 = vmatprep.subr.mxu0 0.0
  %397 = vmatpush1.msra.mxu0 0.0
  %398 = vmatprep.subr.mxu0 0.0
  %399 = vmatpush1.msra.mxu0 0.0
  %400 = vmatprep.subr.mxu0 0.0
  %401 = vmatpush1.msra.mxu0 0.0
  %402 = vmatprep.subr.mxu0 0.0
  %403 = vmatpush1.msra.mxu0 0.0
  %404 = vmatprep.subr.mxu0 0.0
  %405 = vmatpush1.msra.mxu0 0.0
  %406 = vmatprep.mubr.f32.mxu0 0.0
  %407 = vmatmul.mubr.f32.gmra.mrb[0].mxu0 %v340
  %v408 = vpop.f32.mrb[0].mxu0
  %v409 = vadd.f32 %v336, %v408
  %v410 = vpop.f32.mrb[0].mxu0
  %411 = vdwg.mxu0
  %v412 = vmul.f32 %v409, 0.5
  %v413 = vtanh.pop %v412
  %v414 = vmul.f32 %v413, 0.5
  %v415 = vadd.f32 %v414, 0.5
  %v416 = vtanh.pop %v409
  %v417 = vmul.f32 %v415, %v328
  %419 = vrot.lane.b32.xlu0 %v416, 64
  %v420 = vpop.permute.xlu0 %419
  %v422 = vmul.f32 %v415, %v420
  %424 = vrot.lane.b32.xlu0 %v422, 32
  %v425 = vpop.permute.xlu0 %424
  %v427 = vadd.f32 %v417, %v425
  %v428 = vtanh.pop %v427
  %430 = vrot.lane.b32.xlu0 %v428, 64
  %v431 = vpop.permute.xlu0 %430
  %v433 = vmul.f32 %v415, %v431
  %s434 = scalar_lea.vmem %s0, 32
  %v435 = vld [vmem:[%s434] sm:$0xff]
  %437 = vrot.lane.b32.xlu0 %v433, 32
  %v438 = vpop.permute.xlu0 %437
  %v439 = vsel %vm37, %v438, 0
  %441 = vmatprep.subr.mxu0 0.0
  %442 = vmatpush1.msra.mxu0 %v30
  %443 = vmatprep.subr.mxu0 0.0
  %444 = vmatpush1.msra.mxu0 %v31
  %445 = vmatprep.subr.mxu0 0.0
  %446 = vmatpush1.msra.mxu0 %v32
  %447 = vmatprep.subr.mxu0 0.0
  %448 = vmatpush1.msra.mxu0 %v33
  %449 = vmatprep.subr.mxu0 0.0
  %450 = vmatpush1.msra.mxu0 0.0
  %451 = vmatprep.subr.mxu0 0.0
  %452 = vmatpush1.msra.mxu0 0.0
  %453 = vmatprep.subr.mxu0 0.0
  %454 = vmatpush1.msra.mxu0 0.0
  %455 = vmatprep.subr.mxu0 0.0
  %456 = vmatpush1.msra.mxu0 0.0
  %457 = vmatprep.subr.mxu0 0.0
  %458 = vmatpush1.msra.mxu0 0.0
  %459 = vmatprep.subr.mxu0 0.0
  %460 = vmatpush1.msra.mxu0 0.0
  %461 = vmatprep.subr.mxu0 0.0
  %462 = vmatpush1.msra.mxu0 0.0
  %463 = vmatprep.subr.mxu0 0.0
  %464 = vmatpush1.msra.mxu0 0.0
  %465 = vmatprep.subr.mxu0 0.0
  %466 = vmatpush1.msra.mxu0 0.0
  %467 = vmatprep.subr.mxu0 0.0
  %468 = vmatpush1.msra.mxu0 0.0
  %469 = vmatprep.subr.mxu0 0.0
  %470 = vmatpush1.msra.mxu0 0.0
  %471 = vmatprep.subr.mxu0 0.0
  %472 = vmatpush1.msra.mxu0 0.0
  %473 = vmatprep.subr.mxu0 0.0
  %474 = vmatpush1.msra.mxu0 0.0
  %475 = vmatprep.subr.mxu0 0.0
  %476 = vmatpush1.msra.mxu0 0.0
  %477 = vmatprep.subr.mxu0 0.0
  %478 = vmatpush1.msra.mxu0 0.0
  %479 = vmatprep.subr.mxu0 0.0
  %480 = vmatpush1.msra.mxu0 0.0
  %481 = vmatprep.subr.mxu0 0.0
  %482 = vmatpush1.msra.mxu0 0.0
  %483 = vmatprep.subr.mxu0 0.0
  %484 = vmatpush1.msra.mxu0 0.0
  %485 = vmatprep.subr.mxu0 0.0
  %486 = vmatpush1.msra.mxu0 0.0
  %487 = vmatprep.subr.mxu0 0.0
  %488 = vmatpush1.msra.mxu0 0.0
  %489 = vmatprep.subr.mxu0 0.0
  %490 = vmatpush1.msra.mxu0 0.0
  %491 = vmatprep.subr.mxu0 0.0
  %492 = vmatpush1.msra.mxu0 0.0
  %493 = vmatprep.subr.mxu0 0.0
  %494 = vmatpush1.msra.mxu0 0.0
  %495 = vmatprep.subr.mxu0 0.0
  %496 = vmatpush1.msra.mxu0 0.0
  %497 = vmatprep.subr.mxu0 0.0
  %498 = vmatpush1.msra.mxu0 0.0
  %499 = vmatprep.subr.mxu0 0.0
  %500 = vmatpush1.msra.mxu0 0.0
  %501 = vmatprep.subr.mxu0 0.0
  %502 = vmatpush1.msra.mxu0 0.0
  %503 = vmatprep.subr.mxu0 0.0
  %504 = vmatpush1.msra.mxu0 0.0
  %505 = vmatprep.mubr.f32.mxu0 0.0
  %506 = vmatmul.mubr.f32.gmra.mrb[0].mxu0 %v439
  %v507 = vpop.f32.mrb[0].mxu0
  %v508 = vadd.f32 %v435, %v507
  %v509 = vpop.f32.mrb[0].mxu0
  %510 = vdwg.mxu0
  %v511 = vmul.f32 %v508, 0.5
  %v512 = vtanh.pop %v511
  %v513 = vmul.f32 %v512, 0.5
  %v514 = vadd.f32 %v513, 0.5
  %v515 = vtanh.pop %v508
  %v516 = vmul.f32 %v514, %v427
  %518 = vrot.lane.b32.xlu0 %v515, 64
  %v519 = vpop.permute.xlu0 %518
  %v521 = vmul.f32 %v514, %v519
  %523 = vrot.lane.b32.xlu0 %v521, 32
  %v524 = vpop.permute.xlu0 %523
  %v526 = vadd.f32 %v516, %v524
  %v527 = vtanh.pop %v526
  %529 = vrot.lane.b32.xlu0 %v527, 64
  %v530 = vpop.permute.xlu0 %529
  %v532 = vmul.f32 %v514, %v530
  %s533 = scalar_lea.vmem %s0, 40
  %v534 = vld [vmem:[%s533] sm:$0xff]
  %536 = vrot.lane.b32.xlu0 %v532, 32
  %v537 = vpop.permute.xlu0 %536
  %v538 = vsel %vm37, %v537, 0
  %540 = vmatprep.subr.mxu0 0.0
  %541 = vmatpush1.msra.mxu0 %v30
  %542 = vmatprep.subr.mxu0 0.0
  %543 = vmatpush1.msra.mxu0 %v31
  %544 = vmatprep.subr.mxu0 0.0
  %545 = vmatpush1.msra.mxu0 %v32
  %546 = vmatprep.subr.mxu0 0.0
  %547 = vmatpush1.msra.mxu0 %v33
  %548 = vmatprep.subr.mxu0 0.0
  %549 = vmatpush1.msra.mxu0 0.0
  %550 = vmatprep.subr.mxu0 0.0
  %551 = vmatpush1.msra.mxu0 0.0
  %552 = vmatprep.subr.mxu0 0.0
  %553 = vmatpush1.msra.mxu0 0.0
  %554 = vmatprep.subr.mxu0 0.0
  %555 = vmatpush1.msra.mxu0 0.0
  %556 = vmatprep.subr.mxu0 0.0
  %557 = vmatpush1.msra.mxu0 0.0
  %558 = vmatprep.subr.mxu0 0.0
  %559 = vmatpush1.msra.mxu0 0.0
  %560 = vmatprep.subr.mxu0 0.0
  %561 = vmatpush1.msra.mxu0 0.0
  %562 = vmatprep.subr.mxu0 0.0
  %563 = vmatpush1.msra.mxu0 0.0
  %564 = vmatprep.subr.mxu0 0.0
  %565 = vmatpush1.msra.mxu0 0.0
  %566 = vmatprep.subr.mxu0 0.0
  %567 = vmatpush1.msra.mxu0 0.0
  %568 = vmatprep.subr.mxu0 0.0
  %569 = vmatpush1.msra.mxu0 0.0
  %570 = vmatprep.subr.mxu0 0.0
  %571 = vmatpush1.msra.mxu0 0.0
  %572 = vmatprep.subr.mxu0 0.0
  %573 = vmatpush1.msra.mxu0 0.0
  %574 = vmatprep.subr.mxu0 0.0
  %575 = vmatpush1.msra.mxu0 0.0
  %576 = vmatprep.subr.mxu0 0.0
  %577 = vmatpush1.msra.mxu0 0.0
  %578 = vmatprep.subr.mxu0 0.0
  %579 = vmatpush1.msra.mxu0 0.0
  %580 = vmatprep.subr.mxu0 0.0
  %581 = vmatpush1.msra.mxu0 0.0
  %582 = vmatprep.subr.mxu0 0.0
  %583 = vmatpush1.msra.mxu0 0.0
  %584 = vmatprep.subr.mxu0 0.0
  %585 = vmatpush1.msra.mxu0 0.0
  %586 = vmatprep.subr.mxu0 0.0
  %587 = vmatpush1.msra.mxu0 0.0
  %588 = vmatprep.subr.mxu0 0.0
  %589 = vmatpush1.msra.mxu0 0.0
  %590 = vmatprep.subr.mxu0 0.0
  %591 = vmatpush1.msra.mxu0 0.0
  %592 = vmatprep.subr.mxu0 0.0
  %593 = vmatpush1.msra.mxu0 0.0
  %594 = vmatprep.subr.mxu0 0.0
  %595 = vmatpush1.msra.mxu0 0.0
  %596 = vmatprep.subr.mxu0 0.0
  %597 = vmatpush1.msra.mxu0 0.0
  %598 = vmatprep.subr.mxu0 0.0
  %599 = vmatpush1.msra.mxu0 0.0
  %600 = vmatprep.subr.mxu0 0.0
  %601 = vmatpush1.msra.mxu0 0.0
  %602 = vmatprep.subr.mxu0 0.0
  %603 = vmatpush1.msra.mxu0 0.0
  %604 = vmatprep.mubr.f32.mxu0 0.0
  %605 = vmatmul.mubr.f32.gmra.mrb[0].mxu0 %v538
  %v606 = vpop.f32.mrb[0].mxu0
  %v607 = vadd.f32 %v534, %v606
  %v608 = vpop.f32.mrb[0].mxu0
  %609 = vdwg.mxu0
  %v610 = vmul.f32 %v607, 0.5
  %v611 = vtanh.pop %v610
  %v612 = vmul.f32 %v611, 0.5
  %v613 = vadd.f32 %v612, 0.5
  %v614 = vtanh.pop %v607
  %v615 = vmul.f32 %v613, %v526
  %617 = vrot.lane.b32.xlu0 %v614, 64
  %v618 = vpop.permute.xlu0 %617
  %v620 = vmul.f32 %v613, %v618
  %622 = vrot.lane.b32.xlu0 %v620, 32
  %v623 = vpop.permute.xlu0 %622
  %v625 = vadd.f32 %v615, %v623
  %v626 = vtanh.pop %v625
  %628 = vrot.lane.b32.xlu0 %v626, 64
  %v629 = vpop.permute.xlu0 %628
  %v631 = vmul.f32 %v613, %v629
  %s632 = scalar_lea.vmem %s0, 48
  %v633 = vld [vmem:[%s632] sm:$0xff]
  %635 = vrot.lane.b32.xlu0 %v631, 32
  %v636 = vpop.permute.xlu0 %635
  %v637 = vsel %vm37, %v636, 0
  %639 = vmatprep.subr.mxu0 0.0
  %640 = vmatpush1.msra.mxu0 %v30
  %641 = vmatprep.subr.mxu0 0.0
  %642 = vmatpush1.msra.mxu0 %v31
  %643 = vmatprep.subr.mxu0 0.0
  %644 = vmatpush1.msra.mxu0 %v32
  %645 = vmatprep.subr.mxu0 0.0
  %646 = vmatpush1.msra.mxu0 %v33
  %647 = vmatprep.subr.mxu0 0.0
  %648 = vmatpush1.msra.mxu0 0.0
  %649 = vmatprep.subr.mxu0 0.0
  %650 = vmatpush1.msra.mxu0 0.0
  %651 = vmatprep.subr.mxu0 0.0
  %652 = vmatpush1.msra.mxu0 0.0
  %653 = vmatprep.subr.mxu0 0.0
  %654 = vmatpush1.msra.mxu0 0.0
  %655 = vmatprep.subr.mxu0 0.0
  %656 = vmatpush1.msra.mxu0 0.0
  %657 = vmatprep.subr.mxu0 0.0
  %658 = vmatpush1.msra.mxu0 0.0
  %659 = vmatprep.subr.mxu0 0.0
  %660 = vmatpush1.msra.mxu0 0.0
  %661 = vmatprep.subr.mxu0 0.0
  %662 = vmatpush1.msra.mxu0 0.0
  %663 = vmatprep.subr.mxu0 0.0
  %664 = vmatpush1.msra.mxu0 0.0
  %665 = vmatprep.subr.mxu0 0.0
  %666 = vmatpush1.msra.mxu0 0.0
  %667 = vmatprep.subr.mxu0 0.0
  %668 = vmatpush1.msra.mxu0 0.0
  %669 = vmatprep.subr.mxu0 0.0
  %670 = vmatpush1.msra.mxu0 0.0
  %671 = vmatprep.subr.mxu0 0.0
  %672 = vmatpush1.msra.mxu0 0.0
  %673 = vmatprep.subr.mxu0 0.0
  %674 = vmatpush1.msra.mxu0 0.0
  %675 = vmatprep.subr.mxu0 0.0
  %676 = vmatpush1.msra.mxu0 0.0
  %677 = vmatprep.subr.mxu0 0.0
  %678 = vmatpush1.msra.mxu0 0.0
  %679 = vmatprep.subr.mxu0 0.0
  %680 = vmatpush1.msra.mxu0 0.0
  %681 = vmatprep.subr.mxu0 0.0
  %682 = vmatpush1.msra.mxu0 0.0
  %683 = vmatprep.subr.mxu0 0.0
  %684 = vmatpush1.msra.mxu0 0.0
  %685 = vmatprep.subr.mxu0 0.0
  %686 = vmatpush1.msra.mxu0 0.0
  %687 = vmatprep.subr.mxu0 0.0
  %688 = vmatpush1.msra.mxu0 0.0
  %689 = vmatprep.subr.mxu0 0.0
  %690 = vmatpush1.msra.mxu0 0.0
  %691 = vmatprep.subr.mxu0 0.0
  %692 = vmatpush1.msra.mxu0 0.0
  %693 = vmatprep.subr.mxu0 0.0
  %694 = vmatpush1.msra.mxu0 0.0
  %695 = vmatprep.subr.mxu0 0.0
  %696 = vmatpush1.msra.mxu0 0.0
  %697 = vmatprep.subr.mxu0 0.0
  %698 = vmatpush1.msra.mxu0 0.0
  %699 = vmatprep.subr.mxu0 0.0
  %700 = vmatpush1.msra.mxu0 0.0
  %701 = vmatprep.subr.mxu0 0.0
  %702 = vmatpush1.msra.mxu0 0.0
  %703 = vmatprep.mubr.f32.mxu0 0.0
  %704 = vmatmul.mubr.f32.gmra.mrb[0].mxu0 %v637
  %v705 = vpop.f32.mrb[0].mxu0
  %v706 = vadd.f32 %v633, %v705
  %v707 = vpop.f32.mrb[0].mxu0
  %708 = vdwg.mxu0
  %v709 = vmul.f32 %v706, 0.5
  %v710 = vtanh.pop %v709
  %v711 = vmul.f32 %v710, 0.5
  %v712 = vadd.f32 %v711, 0.5
  %v713 = vtanh.pop %v706
  %v714 = vmul.f32 %v712, %v625
  %716 = vrot.lane.b32.xlu0 %v713, 64
  %v717 = vpop.permute.xlu0 %716
  %v719 = vmul.f32 %v712, %v717
  %721 = vrot.lane.b32.xlu0 %v719, 32
  %v722 = vpop.permute.xlu0 %721
  %v724 = vadd.f32 %v714, %v722
  %v725 = vtanh.pop %v724
  %727 = vrot.lane.b32.xlu0 %v725, 64
  %v728 = vpop.permute.xlu0 %727
  %v730 = vmul.f32 %v712, %v728
  %s731 = scalar_lea.vmem %s0, 56
  %v732 = vld [vmem:[%s731] sm:$0xff]
  %734 = vrot.lane.b32.xlu0 %v730, 32
  %v735 = vpop.permute.xlu0 %734
  %v736 = vsel %vm37, %v735, 0
  %738 = vmatprep.subr.mxu0 0.0
  %739 = vmatpush1.msra.mxu0 %v30
  %740 = vmatprep.subr.mxu0 0.0
  %741 = vmatpush1.msra.mxu0 %v31
  %742 = vmatprep.subr.mxu0 0.0
  %743 = vmatpush1.msra.mxu0 %v32
  %744 = vmatprep.subr.mxu0 0.0
  %745 = vmatpush1.msra.mxu0 %v33
  %746 = vmatprep.subr.mxu0 0.0
  %747 = vmatpush1.msra.mxu0 0.0
  %748 = vmatprep.subr.mxu0 0.0
  %749 = vmatpush1.msra.mxu0 0.0
  %750 = vmatprep.subr.mxu0 0.0
  %751 = vmatpush1.msra.mxu0 0.0
  %752 = vmatprep.subr.mxu0 0.0
  %753 = vmatpush1.msra.mxu0 0.0
  %754 = vmatprep.subr.mxu0 0.0
  %755 = vmatpush1.msra.mxu0 0.0
  %756 = vmatprep.subr.mxu0 0.0
  %757 = vmatpush1.msra.mxu0 0.0
  %758 = vmatprep.subr.mxu0 0.0
  %759 = vmatpush1.msra.mxu0 0.0
  %760 = vmatprep.subr.mxu0 0.0
  %761 = vmatpush1.msra.mxu0 0.0
  %762 = vmatprep.subr.mxu0 0.0
  %763 = vmatpush1.msra.mxu0 0.0
  %764 = vmatprep.subr.mxu0 0.0
  %765 = vmatpush1.msra.mxu0 0.0
  %766 = vmatprep.subr.mxu0 0.0
  %767 = vmatpush1.msra.mxu0 0.0
  %768 = vmatprep.subr.mxu0 0.0
  %769 = vmatpush1.msra.mxu0 0.0
  %770 = vmatprep.subr.mxu0 0.0
  %771 = vmatpush1.msra.mxu0 0.0
  %772 = vmatprep.subr.mxu0 0.0
  %773 = vmatpush1.msra.mxu0 0.0
  %774 = vmatprep.subr.mxu0 0.0
  %775 = vmatpush1.msra.mxu0 0.0
  %776 = vmatprep.subr.mxu0 0.0
  %777 = vmatpush1.msra.mxu0 0.0
  %778 = vmatprep.subr.mxu0 0.0
  %779 = vmatpush1.msra.mxu0 0.0
  %780 = vmatprep.subr.mxu0 0.0
  %781 = vmatpush1.msra.mxu0 0.0
  %782 = vmatprep.subr.mxu0 0.0
  %783 = vmatpush1.msra.mxu0 0.0
  %784 = vmatprep.subr.mxu0 0.0
  %785 = vmatpush1.msra.mxu0 0.0
  %786 = vmatprep.subr.mxu0 0.0
  %787 = vmatpush1.msra.mxu0 0.0
  %788 = vmatprep.subr.mxu0 0.0
  %789 = vmatpush1.msra.mxu0 0.0
  %790 = vmatprep.subr.mxu0 0.0
  %791 = vmatpush1.msra.mxu0 0.0
  %792 = vmatprep.subr.mxu0 0.0
  %793 = vmatpush1.msra.mxu0 0.0
  %794 = vmatprep.subr.mxu0 0.0
  %795 = vmatpush1.msra.mxu0 0.0
  %796 = vmatprep.subr.mxu0 0.0
  %797 = vmatpush1.msra.mxu0 0.0
  %798 = vmatprep.subr.mxu0 0.0
  %799 = vmatpush1.msra.mxu0 0.0
  %800 = vmatprep.subr.mxu0 0.0
  %801 = vmatpush1.msra.mxu0 0.0
  %802 = vmatprep.mubr.f32.mxu0 0.0
  %803 = vmatmul.mubr.f32.gmra.mrb[0].mxu0 %v736
  %v804 = vpop.f32.mrb[0].mxu0
  %v805 = vadd.f32 %v732, %v804
  %v806 = vpop.f32.mrb[0].mxu0
  %807 = vdwg.mxu0
  %v808 = vmul.f32 %v805, 0.5
  %v809 = vtanh.pop %v808
  %v810 = vmul.f32 %v809, 0.5
  %v811 = vadd.f32 %v810, 0.5
  %v812 = vtanh.pop %v805
  %v813 = vmul.f32 %v811, %v724
  %815 = vrot.lane.b32.xlu0 %v812, 64
  %v816 = vpop.permute.xlu0 %815
  %v818 = vmul.f32 %v811, %v816
  %820 = vrot.lane.b32.xlu0 %v818, 32
  %v821 = vpop.permute.xlu0 %820
  %v823 = vadd.f32 %v813, %v821
  %v824 = vtanh.pop %v823
  %826 = vrot.lane.b32.xlu0 %v824, 64
  %v827 = vpop.permute.xlu0 %826
  %v829 = vmul.f32 %v811, %v827
  %831 = vrot.lane.b32.xlu0 %v829, 32
  %v832 = vpop.permute.xlu0 %831
  %834 = vst.msk [vmem:[#allocation2] sm:$0xff] %vm37, %v832
  %836 = vrot.lane.b32.xlu0 %v823, 96
  %v837 = vpop.permute.xlu0 %836
  %839 = vst.msk [vmem:[#allocation3] sm:$0xff] %vm37, %v837
  // Predicated region
  $region26: #{_lambda_.1} parent=0 // pred_check
    %p840 = pneg %p20
  $region27: #{_lambda_.1} parent=0 // pred_check_branch
    %842 = sbr.rel (%p840) target = $region29
  $region28: #{_lambda_.1} parent=0 // pred_region
    %v843 = vld [vmem:[%s3] sm:$0xff]
    %v844 = vld [vmem:[%s3 + $0x8] sm:$0xff]
    %v845 = vld [vmem:[%s3 + $0x10] sm:$0xff]
    %v846 = vld [vmem:[%s3 + $0x18] sm:$0xff]
    %v847 = vld [vmem:[%s4] sm:$0x1]
    %v849 = vlaneseq
    %v850 = vshrl.u32 %v849, 7
    %v851 = vsub.s32 0, %v850
    %v852 = vrot.slane %v847, %v851
    %v854 = vsel %vm37, %v832, 0
    %856 = vmatprep.subr.mxu0 0.0
    %857 = vmatpush1.msra.mxu0 %v843
    %858 = vmatprep.subr.mxu0 0.0
    %859 = vmatpush1.msra.mxu0 %v844
    %860 = vmatprep.subr.mxu0 0.0
    %861 = vmatpush1.msra.mxu0 %v845
    %862 = vmatprep.subr.mxu0 0.0
    %863 = vmatpush1.msra.mxu0 %v846
    %864 = vmatprep.subr.mxu0 0.0
    %865 = vmatpush1.msra.mxu0 0.0
    %866 = vmatprep.subr.mxu0 0.0
    %867 = vmatpush1.msra.mxu0 0.0
    %868 = vmatprep.subr.mxu0 0.0
    %869 = vmatpush1.msra.mxu0 0.0
    %870 = vmatprep.subr.mxu0 0.0
    %871 = vmatpush1.msra.mxu0 0.0
    %872 = vmatprep.subr.mxu0 0.0
    %873 = vmatpush1.msra.mxu0 0.0
    %874 = vmatprep.subr.mxu0 0.0
    %875 = vmatpush1.msra.mxu0 0.0
    %876 = vmatprep.subr.mxu0 0.0
    %877 = vmatpush1.msra.mxu0 0.0
    %878 = vmatprep.subr.mxu0 0.0
    %879 = vmatpush1.msra.mxu0 0.0
    %880 = vmatprep.subr.mxu0 0.0
    %881 = vmatpush1.msra.mxu0 0.0
    %882 = vmatprep.subr.mxu0 0.0
    %883 = vmatpush1.msra.mxu0 0.0
    %884 = vmatprep.subr.mxu0 0.0
    %885 = vmatpush1.msra.mxu0 0.0
    %886 = vmatprep.subr.mxu0 0.0
    %887 = vmatpush1.msra.mxu0 0.0
    %888 = vmatprep.subr.mxu0 0.0
    %889 = vmatpush1.msra.mxu0 0.0
    %890 = vmatprep.subr.mxu0 0.0
    %891 = vmatpush1.msra.mxu0 0.0
    %892 = vmatprep.subr.mxu0 0.0
    %893 = vmatpush1.msra.mxu0 0.0
    %894 = vmatprep.subr.mxu0 0.0
    %895 = vmatpush1.msra.mxu0 0.0
    %896 = vmatprep.subr.mxu0 0.0
    %897 = vmatpush1.msra.mxu0 0.0
    %898 = vmatprep.subr.mxu0 0.0
    %899 = vmatpush1.msra.mxu0 0.0
    %900 = vmatprep.subr.mxu0 0.0
    %901 = vmatpush1.msra.mxu0 0.0
    %902 = vmatprep.subr.mxu0 0.0
    %903 = vmatpush1.msra.mxu0 0.0
    %904 = vmatprep.subr.mxu0 0.0
    %905 = vmatpush1.msra.mxu0 0.0
    %906 = vmatprep.subr.mxu0 0.0
    %907 = vmatpush1.msra.mxu0 0.0
    %908 = vmatprep.subr.mxu0 0.0
    %909 = vmatpush1.msra.mxu0 0.0
    %910 = vmatprep.subr.mxu0 0.0
    %911 = vmatpush1.msra.mxu0 0.0
    %912 = vmatprep.subr.mxu0 0.0
    %913 = vmatpush1.msra.mxu0 0.0
    %914 = vmatprep.subr.mxu0 0.0
    %915 = vmatpush1.msra.mxu0 0.0
    %916 = vmatprep.subr.mxu0 0.0
    %917 = vmatpush1.msra.mxu0 0.0
    %918 = vmatprep.subr.mxu0 0.0
    %919 = vmatpush1.msra.mxu0 0.0
    %920 = vmatprep.mubr.f32.mxu0 0.0
    %921 = vmatmul.mubr.f32.gmra.mrb[0].mxu0 %v854
    %v922 = vpop.f32.mrb[0].mxu0
    %v923 = vadd.f32 %v852, %v922
    %v924 = vpop.f32.mrb[0].mxu0
    %925 = vdwg.mxu0
    %926 = vrot.lane.b32.xlu0 %v829, 96
    %v927 = vpop.permute.xlu0 %926
    %929 = vrot.lane.b32.xlu0 %v823, 64
    %v930 = vpop.permute.xlu0 %929
    %vm932 = vcmask 523264
    %v933 = vsel %vm932, %v923, %v927
    %vm934 = vcmask 785408
    %v935 = vsel %vm934, %v933, %v930
    %936 = vst [vmem:[%s5] sm:$0xff] %v935
  $region29: #{_lambda_.1} parent=0 // pred_fallthru
    _
  // Predicated region
  $region30: #{_lambda_.1} parent=0 // pred_check
    _
  $region31: #{_lambda_.1} parent=0 // pred_check_branch
    %938 = sbr.rel (0) target = $region33
  $region32: #{_lambda_.1} parent=0 // pred_region
    _
  $region33: #{_lambda_.1} parent=0 // pred_fallthru
    _
  // Predicated region
  $region34: #{_lambda_.1} parent=0 // pred_check
    _
  $region35: #{_lambda_.1} parent=0 // pred_check_branch
    %940 = sbr.rel (0) target = $region37
  $region36: #{_lambda_.1} parent=0 // pred_region
    _
  $region37: #{_lambda_.1} parent=0 // pred_fallthru
    _

</llo_original>
